<compile_context>
chip_gen: v7x
topology: tpu7x:2x2x1
jax: 0.10.0
libtpu: 0.0.40
codegen_flags: <defaults>
</compile_context>

<pallas_src>
import jax
import jax.numpy as jnp
from jax import lax
from jax.experimental import pallas as pl
from jax.experimental.pallas import tpu as pltpu

PARTICLES = 5
HID = PARTICLES * 2          # 10 (input size == hidden size)
LANE = 128                   # one vreg lane block holds all four packed gates
NGATE = 4
GS = LANE // NGATE           # 32 lanes per gate slot

# Row layout of the single packed parameter slab. Segment starts are multiples
# of 8 so the one-time in-kernel splits are sublane-aligned loads.
ROW_W_IH = 0
ROW_W_HH = 16
ROW_BIAS = 32
W_ROWS = 40                  # 33 used rows, padded to a multiple of 8


def lstm_seq_kernel(x_ref, w_ref, hc_ref, out_ref, xw_s):
    """Full LSTM recurrence over the sequence inside one kernel call.

    x_ref:  (T, H)        full input sequence
    w_ref:  (W_ROWS, 128) packed params: rows [0:H)=W_ih^T, [16:16+H)=W_hh^T,
                          row 32 = b_ih+b_hh; gate layout [i|f|o|g], 32 lanes each
    hc_ref: (2, H)        row 0 = h0, row 1 = c0
    out_ref:(B, H)        hidden outputs of the final B steps only
    xw_s:   (T, 128)      scratch for the hoisted input projection
    """
    T = x_ref.shape[0]
    B = out_ref.shape[0]
    H = hc_ref.shape[1]

    # One-time split of the coalesced parameter DMA (static, 8-aligned rows).
    wih_t = w_ref[ROW_W_IH:ROW_W_IH + H, :]          # (H, 128)
    whh_t = w_ref[ROW_W_HH:ROW_W_HH + H, :]          # (H, 128)
    bias = w_ref[ROW_BIAS:ROW_BIAS + 1, :]           # (1, 128)

    # Hoisted input projection: one (T,H)x(H,128) MXU matmul off the serial
    # chain; xw[t] = x[t] @ W_ih^T + (b_ih + b_hh) in packed-gate layout.
    xw_s[...] = (jnp.dot(x_ref[...], wih_t,
                         preferred_element_type=jnp.float32) + bias)

    # h / c carried as plain values (single vreg each); no per-step VMEM trip.
    h = hc_ref[0:1, :]                               # (1, H)
    c = hc_ref[1:2, :]                               # (1, H)

    hs = []
    # Fully unrolled recurrence: T is static and small, giving the LLO
    # scheduler full cross-iteration visibility.  (For large T switch to
    # lax.fori_loop(..., unroll=4-8) with a pl.when-guarded store.)
    for t in range(T):
        gates = xw_s[t:t + 1, :] + jnp.dot(
            h, whh_t, preferred_element_type=jnp.float32)         # (1, 128)

        # Single-EUP sigmoid: sigmoid(x) = 0.5*tanh(0.5*x) + 0.5 — one tanh
        # over the whole 128-lane gate vreg (valid for the i|f|o slots).
        sig = 0.5 * jnp.tanh(0.5 * gates) + 0.5
        tg = jnp.tanh(gates)                                       # g slot

        # Packed 32-lane gate slots [i|f|o|g]; each slice takes exactly H
        # lanes, so the 0.5-valued pad lanes never reach c/h.  The lane
        # extractions land on the otherwise-idle XLU.
        i_g = sig[:, 0 * GS:0 * GS + H]
        f_g = sig[:, 1 * GS:1 * GS + H]
        o_g = sig[:, 2 * GS:2 * GS + H]
        g_g = tg[:, 3 * GS:3 * GS + H]

        c = f_g * c + i_g * g_g
        h = o_g * jnp.tanh(c)

        if t >= T - B:
            hs.append(h)

    # Single dense (B, H) store instead of B masked one-row stores.
    out_ref[...] = jnp.concatenate(hs, axis=0)


def _pack_gates(w):
    """Last axis (4H) in PyTorch gate order [i|f|g|o] -> (..., 128) packed
    [i|f|o|g], each gate zero-padded into its own 32-lane slot."""
    H = HID
    i_b = w[..., 0:H]
    f_b = w[..., H:2 * H]
    g_b = w[..., 2 * H:3 * H]
    o_b = w[..., 3 * H:4 * H]
    pad = [(0, 0)] * (w.ndim - 1) + [(0, GS - H)]
    return jnp.concatenate(
        [jnp.pad(b, pad) for b in (i_b, f_b, o_b, g_b)], axis=-1)


def _pack_params(w_ih, w_hh, b_ih, b_hh):
    """Build the single (W_ROWS, 128) parameter slab (one DMA)."""
    H = HID
    wih_t = _pack_gates(jnp.asarray(w_ih, jnp.float32).T)            # (H, 128)
    whh_t = _pack_gates(jnp.asarray(w_hh, jnp.float32).T)            # (H, 128)
    bias = _pack_gates((jnp.asarray(b_ih, jnp.float32)
                        + jnp.asarray(b_hh, jnp.float32)).reshape(1, 4 * H))
    w = jnp.zeros((W_ROWS, LANE), jnp.float32)
    w = w.at[ROW_W_IH:ROW_W_IH + H, :].set(wih_t)
    w = w.at[ROW_W_HH:ROW_W_HH + H, :].set(whh_t)
    w = w.at[ROW_BIAS:ROW_BIAS + 1, :].set(bias)
    return w


def lstm_sequence_pallas(x_flat, w_ih, w_hh, b_ih, b_hh, h0, c0, num_out):
    """x_flat: (T, HID) float32. Returns hidden outputs of the last `num_out`
    steps, shape (num_out, HID)."""
    T, D = x_flat.shape
    H = HID
    assert D == H and num_out <= T

    w_packed = _pack_params(w_ih, w_hh, b_ih, b_hh)                   # (40, 128)
    hc0 = jnp.concatenate([jnp.asarray(h0, jnp.float32).reshape(1, H),
                           jnp.asarray(c0, jnp.float32).reshape(1, H)],
                          axis=0)                                     # (2, H)

    vmem = pl.BlockSpec(memory_space=pltpu.MemorySpace.VMEM)
    return pl.pallas_call(
        lstm_seq_kernel,
        out_shape=jax.ShapeDtypeStruct((num_out, H), jnp.float32),
        in_specs=[vmem, vmem, vmem],
        out_specs=vmem,
        scratch_shapes=[pltpu.VMEM((T, LANE), jnp.float32)],
    )(x_flat.astype(jnp.float32), w_packed, hc0)


def net_forward(x, batch_size, params, hidden):
    """Mirrors Net.forward: hidden state carried across the outer loop; returns
    the last outer step's LSTM output, shape (batch_size, 1, 10)."""
    w_ih, w_hh, b_ih, b_hh = params
    h0, c0 = hidden
    N, B, D = x.shape
    assert B == batch_size and D == HID

    x_flat = x.reshape(N * B, D)
    out_last = lstm_sequence_pallas(x_flat, w_ih, w_hh, b_ih, b_hh, h0, c0,
                                    num_out=B)                        # (B, HID)
    return out_last.reshape(B, 1, HID)


def lstm_reference(x_flat, w_ih, w_hh, b_ih, b_hh, h0, c0):
    """Pure-JAX reference (PyTorch gate order) for validation."""
    H = HID

    def cell(carry, xt):
        h, c = carry
        gates = xt @ w_ih.T + b_ih + h @ w_hh.T + b_hh
        i_g = jax.nn.sigmoid(gates[0:H])
        f_g = jax.nn.sigmoid(gates[H:2 * H])
        g_g = jnp.tanh(gates[2 * H:3 * H])
        o_g = jax.nn.sigmoid(gates[3 * H:4 * H])
        c_new = f_g * c + i_g * g_g
        h_new = o_g * jnp.tanh(c_new)
        return (h_new, c_new), h_new

    (_, _), hs = lax.scan(cell, (h0.reshape(H), c0.reshape(H)), x_flat)
    return hs


if __name__ == "__main__":
    key = jax.random.PRNGKey(0)
    k_x, k_wih, k_whh, k_bih, k_bhh, k_h0, k_c0 = jax.random.split(key, 7)

    N_outer = 3          # number of outer-loop iterations ("for i in x")
    batch_size = 4       # PyTorch treats this as the LSTM sequence length

    # Deterministic parameter init (same shapes as nn.LSTM(10, 10)).
    scale = 1.0 / jnp.sqrt(HID)
    w_ih = jax.random.uniform(k_wih, (4 * HID, HID), jnp.float32, -scale, scale)
    w_hh = jax.random.uniform(k_whh, (4 * HID, HID), jnp.float32, -scale, scale)
    b_ih = jax.random.uniform(k_bih, (4 * HID,), jnp.float32, -scale, scale)
    b_hh = jax.random.uniform(k_bhh, (4 * HID,), jnp.float32, -scale, scale)

    # self.hidden = (randn(1,1,10), randn(1,1,10))
    h0 = jax.random.normal(k_h0, (1, 1, HID), jnp.float32)
    c0 = jax.random.normal(k_c0, (1, 1, HID), jnp.float32)

    x = jax.random.normal(k_x, (N_outer, batch_size, HID), jnp.float32)

    out = net_forward(x, batch_size, (w_ih, w_hh, b_ih, b_hh), (h0, c0))
    out = jax.block_until_ready(out)
    assert out.shape == (batch_size, 1, HID)

    # Validate against pure-JAX reference.
    ref_all = lstm_reference(x.reshape(-1, HID), w_ih, w_hh, b_ih, b_hh, h0, c0)
    ref = ref_all[-batch_size:].reshape(batch_size, 1, HID)
    assert jnp.allclose(out, ref, atol=1e-5, rtol=1e-5), "mismatch vs reference"

    print("KERNEL_OK")
</pallas_src>

<mosaic_0001>
module attributes {stable_mosaic.version = 11 : i64} {
  func.func @lstm_seq_kernel(%arg0: memref<12x10xf32, #tpu.memory_space<vmem>>, %arg1: memref<40x128xf32, #tpu.memory_space<vmem>>, %arg2: memref<2x10xf32, #tpu.memory_space<vmem>>, %arg3: memref<4x10xf32, #tpu.memory_space<vmem>>, %arg4: memref<12x128xf32, #tpu.memory_space<vmem>>) attributes {dimension_semantics = [], scalar_prefetch = 0 : i64, scratch_operands = 1 : i64, tpu.core_type = #tpu.core_type<tc>} {
    %c0 = arith.constant 0 : index
    %c0_0 = arith.constant 0 : index
    %0 = vector.load %arg1[%c0, %c0_0] : memref<40x128xf32, #tpu.memory_space<vmem>>, vector<10x128xf32>
    %c16 = arith.constant 16 : index
    %c0_1 = arith.constant 0 : index
    %1 = vector.load %arg1[%c16, %c0_1] : memref<40x128xf32, #tpu.memory_space<vmem>>, vector<10x128xf32>
    %c32 = arith.constant 32 : index
    %c0_2 = arith.constant 0 : index
    %2 = vector.load %arg1[%c32, %c0_2] : memref<40x128xf32, #tpu.memory_space<vmem>>, vector<1x128xf32>
    %c0_3 = arith.constant 0 : index
    %c0_4 = arith.constant 0 : index
    %3 = vector.load %arg0[%c0_3, %c0_4] : memref<12x10xf32, #tpu.memory_space<vmem>>, vector<12x10xf32>
    %cst = arith.constant dense<0.000000e+00> : vector<12x128xf32>
    %4 = tpu.matmul %3, %0, %cst {dimension_numbers = #tpu.dot_dimension_numbers<[1], [0], [0], [1], [0, 0, 1, 1], [], []>} : vector<12x10xf32>, vector<10x128xf32>, vector<12x128xf32> -> vector<12x128xf32>
    %5 = vector.broadcast %2 : vector<1x128xf32> to vector<12x128xf32>
    %6 = arith.addf %4, %5 : vector<12x128xf32>
    %c0_5 = arith.constant 0 : index
    %c0_6 = arith.constant 0 : index
    %7 = vector.load %arg4[%c0_5, %c0_6] : memref<12x128xf32, #tpu.memory_space<vmem>>, vector<12x128xf32>
    tpu.vector_store %arg4[%c0_5, %c0_6], %6 {strides = array<i32>} : memref<12x128xf32, #tpu.memory_space<vmem>>, vector<12x128xf32>,
    %c0_7 = arith.constant 0 : index
    %c0_8 = arith.constant 0 : index
    %8 = vector.load %arg2[%c0_7, %c0_8] : memref<2x10xf32, #tpu.memory_space<vmem>>, vector<1x10xf32>
    %c1 = arith.constant 1 : index
    %c0_9 = arith.constant 0 : index
    %9 = vector.load %arg2[%c1, %c0_9] : memref<2x10xf32, #tpu.memory_space<vmem>>, vector<1x10xf32>
    %c0_10 = arith.constant 0 : index
    %c0_11 = arith.constant 0 : index
    %10 = vector.load %arg4[%c0_10, %c0_11] : memref<12x128xf32, #tpu.memory_space<vmem>>, vector<1x128xf32>
    %cst_12 = arith.constant dense<0.000000e+00> : vector<1x128xf32>
    %11 = tpu.matmul %8, %1, %cst_12 {dimension_numbers = #tpu.dot_dimension_numbers<[1], [0], [0], [1], [0, 0, 1, 1], [], []>} : vector<1x10xf32>, vector<10x128xf32>, vector<1x128xf32> -> vector<1x128xf32>
    %12 = arith.addf %10, %11 : vector<1x128xf32>
    %cst_13 = arith.constant 5.000000e-01 : f32
    %13 = vector.broadcast %cst_13 : f32 to vector<1x128xf32>
    %14 = arith.mulf %13, %12 : vector<1x128xf32>
    %15 = math.tanh %14 : vector<1x128xf32>
    %cst_14 = arith.constant 5.000000e-01 : f32
    %16 = vector.broadcast %cst_14 : f32 to vector<1x128xf32>
    %17 = arith.mulf %16, %15 : vector<1x128xf32>
    %cst_15 = arith.constant 5.000000e-01 : f32
    %18 = vector.broadcast %cst_15 : f32 to vector<1x128xf32>
    %19 = arith.addf %17, %18 : vector<1x128xf32>
    %20 = math.tanh %12 : vector<1x128xf32>
    %21 = vector.extract_strided_slice %19 {offsets = [0, 0], sizes = [1, 10], strides = [1, 1]} : vector<1x128xf32> to vector<1x10xf32>
    %22 = vector.extract_strided_slice %19 {offsets = [0, 32], sizes = [1, 10], strides = [1, 1]} : vector<1x128xf32> to vector<1x10xf32>
    %23 = vector.extract_strided_slice %19 {offsets = [0, 64], sizes = [1, 10], strides = [1, 1]} : vector<1x128xf32> to vector<1x10xf32>
    %24 = vector.extract_strided_slice %20 {offsets = [0, 96], sizes = [1, 10], strides = [1, 1]} : vector<1x128xf32> to vector<1x10xf32>
    %25 = arith.mulf %22, %9 : vector<1x10xf32>
    %26 = arith.mulf %21, %24 : vector<1x10xf32>
    %27 = arith.addf %25, %26 : vector<1x10xf32>
    %28 = math.tanh %27 : vector<1x10xf32>
    %29 = arith.mulf %23, %28 : vector<1x10xf32>
    %c1_16 = arith.constant 1 : index
    %c0_17 = arith.constant 0 : index
    %30 = vector.load %arg4[%c1_16, %c0_17] : memref<12x128xf32, #tpu.memory_space<vmem>>, vector<1x128xf32>
    %cst_18 = arith.constant dense<0.000000e+00> : vector<1x128xf32>
    %31 = tpu.matmul %29, %1, %cst_18 {dimension_numbers = #tpu.dot_dimension_numbers<[1], [0], [0], [1], [0, 0, 1, 1], [], []>} : vector<1x10xf32>, vector<10x128xf32>, vector<1x128xf32> -> vector<1x128xf32>
    %32 = arith.addf %30, %31 : vector<1x128xf32>
    %cst_19 = arith.constant 5.000000e-01 : f32
    %33 = vector.broadcast %cst_19 : f32 to vector<1x128xf32>
    %34 = arith.mulf %33, %32 : vector<1x128xf32>
    %35 = math.tanh %34 : vector<1x128xf32>
    %cst_20 = arith.constant 5.000000e-01 : f32
    %36 = vector.broadcast %cst_20 : f32 to vector<1x128xf32>
    %37 = arith.mulf %36, %35 : vector<1x128xf32>
    %cst_21 = arith.constant 5.000000e-01 : f32
    %38 = vector.broadcast %cst_21 : f32 to vector<1x128xf32>
    %39 = arith.addf %37, %38 : vector<1x128xf32>
    %40 = math.tanh %32 : vector<1x128xf32>
    %41 = vector.extract_strided_slice %39 {offsets = [0, 0], sizes = [1, 10], strides = [1, 1]} : vector<1x128xf32> to vector<1x10xf32>
    %42 = vector.extract_strided_slice %39 {offsets = [0, 32], sizes = [1, 10], strides = [1, 1]} : vector<1x128xf32> to vector<1x10xf32>
    %43 = vector.extract_strided_slice %39 {offsets = [0, 64], sizes = [1, 10], strides = [1, 1]} : vector<1x128xf32> to vector<1x10xf32>
    %44 = vector.extract_strided_slice %40 {offsets = [0, 96], sizes = [1, 10], strides = [1, 1]} : vector<1x128xf32> to vector<1x10xf32>
    %45 = arith.mulf %42, %27 : vector<1x10xf32>
    %46 = arith.mulf %41, %44 : vector<1x10xf32>
    %47 = arith.addf %45, %46 : vector<1x10xf32>
    %48 = math.tanh %47 : vector<1x10xf32>
    %49 = arith.mulf %43, %48 : vector<1x10xf32>
    %c2 = arith.constant 2 : index
    %c0_22 = arith.constant 0 : index
    %50 = vector.load %arg4[%c2, %c0_22] : memref<12x128xf32, #tpu.memory_space<vmem>>, vector<1x128xf32>
    %cst_23 = arith.constant dense<0.000000e+00> : vector<1x128xf32>
    %51 = tpu.matmul %49, %1, %cst_23 {dimension_numbers = #tpu.dot_dimension_numbers<[1], [0], [0], [1], [0, 0, 1, 1], [], []>} : vector<1x10xf32>, vector<10x128xf32>, vector<1x128xf32> -> vector<1x128xf32>
    %52 = arith.addf %50, %51 : vector<1x128xf32>
    %cst_24 = arith.constant 5.000000e-01 : f32
    %53 = vector.broadcast %cst_24 : f32 to vector<1x128xf32>
    %54 = arith.mulf %53, %52 : vector<1x128xf32>
    %55 = math.tanh %54 : vector<1x128xf32>
    %cst_25 = arith.constant 5.000000e-01 : f32
    %56 = vector.broadcast %cst_25 : f32 to vector<1x128xf32>
    %57 = arith.mulf %56, %55 : vector<1x128xf32>
    %cst_26 = arith.constant 5.000000e-01 : f32
    %58 = vector.broadcast %cst_26 : f32 to vector<1x128xf32>
    %59 = arith.addf %57, %58 : vector<1x128xf32>
    %60 = math.tanh %52 : vector<1x128xf32>
    %61 = vector.extract_strided_slice %59 {offsets = [0, 0], sizes = [1, 10], strides = [1, 1]} : vector<1x128xf32> to vector<1x10xf32>
    %62 = vector.extract_strided_slice %59 {offsets = [0, 32], sizes = [1, 10], strides = [1, 1]} : vector<1x128xf32> to vector<1x10xf32>
    %63 = vector.extract_strided_slice %59 {offsets = [0, 64], sizes = [1, 10], strides = [1, 1]} : vector<1x128xf32> to vector<1x10xf32>
    %64 = vector.extract_strided_slice %60 {offsets = [0, 96], sizes = [1, 10], strides = [1, 1]} : vector<1x128xf32> to vector<1x10xf32>
    %65 = arith.mulf %62, %47 : vector<1x10xf32>
    %66 = arith.mulf %61, %64 : vector<1x10xf32>
    %67 = arith.addf %65, %66 : vector<1x10xf32>
    %68 = math.tanh %67 : vector<1x10xf32>
    %69 = arith.mulf %63, %68 : vector<1x10xf32>
    %c3 = arith.constant 3 : index
    %c0_27 = arith.constant 0 : index
    %70 = vector.load %arg4[%c3, %c0_27] : memref<12x128xf32, #tpu.memory_space<vmem>>, vector<1x128xf32>
    %cst_28 = arith.constant dense<0.000000e+00> : vector<1x128xf32>
    %71 = tpu.matmul %69, %1, %cst_28 {dimension_numbers = #tpu.dot_dimension_numbers<[1], [0], [0], [1], [0, 0, 1, 1], [], []>} : vector<1x10xf32>, vector<10x128xf32>, vector<1x128xf32> -> vector<1x128xf32>
    %72 = arith.addf %70, %71 : vector<1x128xf32>
    %cst_29 = arith.constant 5.000000e-01 : f32
    %73 = vector.broadcast %cst_29 : f32 to vector<1x128xf32>
    %74 = arith.mulf %73, %72 : vector<1x128xf32>
    %75 = math.tanh %74 : vector<1x128xf32>
    %cst_30 = arith.constant 5.000000e-01 : f32
    %76 = vector.broadcast %cst_30 : f32 to vector<1x128xf32>
    %77 = arith.mulf %76, %75 : vector<1x128xf32>
    %cst_31 = arith.constant 5.000000e-01 : f32
    %78 = vector.broadcast %cst_31 : f32 to vector<1x128xf32>
    %79 = arith.addf %77, %78 : vector<1x128xf32>
    %80 = math.tanh %72 : vector<1x128xf32>
    %81 = vector.extract_strided_slice %79 {offsets = [0, 0], sizes = [1, 10], strides = [1, 1]} : vector<1x128xf32> to vector<1x10xf32>
    %82 = vector.extract_strided_slice %79 {offsets = [0, 32], sizes = [1, 10], strides = [1, 1]} : vector<1x128xf32> to vector<1x10xf32>
    %83 = vector.extract_strided_slice %79 {offsets = [0, 64], sizes = [1, 10], strides = [1, 1]} : vector<1x128xf32> to vector<1x10xf32>
    %84 = vector.extract_strided_slice %80 {offsets = [0, 96], sizes = [1, 10], strides = [1, 1]} : vector<1x128xf32> to vector<1x10xf32>
    %85 = arith.mulf %82, %67 : vector<1x10xf32>
    %86 = arith.mulf %81, %84 : vector<1x10xf32>
    %87 = arith.addf %85, %86 : vector<1x10xf32>
    %88 = math.tanh %87 : vector<1x10xf32>
    %89 = arith.mulf %83, %88 : vector<1x10xf32>
    %c4 = arith.constant 4 : index
    %c0_32 = arith.constant 0 : index
    %90 = vector.load %arg4[%c4, %c0_32] : memref<12x128xf32, #tpu.memory_space<vmem>>, vector<1x128xf32>
    %cst_33 = arith.constant dense<0.000000e+00> : vector<1x128xf32>
    %91 = tpu.matmul %89, %1, %cst_33 {dimension_numbers = #tpu.dot_dimension_numbers<[1], [0], [0], [1], [0, 0, 1, 1], [], []>} : vector<1x10xf32>, vector<10x128xf32>, vector<1x128xf32> -> vector<1x128xf32>
    %92 = arith.addf %90, %91 : vector<1x128xf32>
    %cst_34 = arith.constant 5.000000e-01 : f32
    %93 = vector.broadcast %cst_34 : f32 to vector<1x128xf32>
    %94 = arith.mulf %93, %92 : vector<1x128xf32>
    %95 = math.tanh %94 : vector<1x128xf32>
    %cst_35 = arith.constant 5.000000e-01 : f32
    %96 = vector.broadcast %cst_35 : f32 to vector<1x128xf32>
    %97 = arith.mulf %96, %95 : vector<1x128xf32>
    %cst_36 = arith.constant 5.000000e-01 : f32
    %98 = vector.broadcast %cst_36 : f32 to vector<1x128xf32>
    %99 = arith.addf %97, %98 : vector<1x128xf32>
    %100 = math.tanh %92 : vector<1x128xf32>
    %101 = vector.extract_strided_slice %99 {offsets = [0, 0], sizes = [1, 10], strides = [1, 1]} : vector<1x128xf32> to vector<1x10xf32>
    %102 = vector.extract_strided_slice %99 {offsets = [0, 32], sizes = [1, 10], strides = [1, 1]} : vector<1x128xf32> to vector<1x10xf32>
    %103 = vector.extract_strided_slice %99 {offsets = [0, 64], sizes = [1, 10], strides = [1, 1]} : vector<1x128xf32> to vector<1x10xf32>
    %104 = vector.extract_strided_slice %100 {offsets = [0, 96], sizes = [1, 10], strides = [1, 1]} : vector<1x128xf32> to vector<1x10xf32>
    %105 = arith.mulf %102, %87 : vector<1x10xf32>
    %106 = arith.mulf %101, %104 : vector<1x10xf32>
    %107 = arith.addf %105, %106 : vector<1x10xf32>
    %108 = math.tanh %107 : vector<1x10xf32>
    %109 = arith.mulf %103, %108 : vector<1x10xf32>
    %c5 = arith.constant 5 : index
    %c0_37 = arith.constant 0 : index
    %110 = vector.load %arg4[%c5, %c0_37] : memref<12x128xf32, #tpu.memory_space<vmem>>, vector<1x128xf32>
    %cst_38 = arith.constant dense<0.000000e+00> : vector<1x128xf32>
    %111 = tpu.matmul %109, %1, %cst_38 {dimension_numbers = #tpu.dot_dimension_numbers<[1], [0], [0], [1], [0, 0, 1, 1], [], []>} : vector<1x10xf32>, vector<10x128xf32>, vector<1x128xf32> -> vector<1x128xf32>
    %112 = arith.addf %110, %111 : vector<1x128xf32>
    %cst_39 = arith.constant 5.000000e-01 : f32
    %113 = vector.broadcast %cst_39 : f32 to vector<1x128xf32>
    %114 = arith.mulf %113, %112 : vector<1x128xf32>
    %115 = math.tanh %114 : vector<1x128xf32>
    %cst_40 = arith.constant 5.000000e-01 : f32
    %116 = vector.broadcast %cst_40 : f32 to vector<1x128xf32>
    %117 = arith.mulf %116, %115 : vector<1x128xf32>
    %cst_41 = arith.constant 5.000000e-01 : f32
    %118 = vector.broadcast %cst_41 : f32 to vector<1x128xf32>
    %119 = arith.addf %117, %118 : vector<1x128xf32>
    %120 = math.tanh %112 : vector<1x128xf32>
    %121 = vector.extract_strided_slice %119 {offsets = [0, 0], sizes = [1, 10], strides = [1, 1]} : vector<1x128xf32> to vector<1x10xf32>
    %122 = vector.extract_strided_slice %119 {offsets = [0, 32], sizes = [1, 10], strides = [1, 1]} : vector<1x128xf32> to vector<1x10xf32>
    %123 = vector.extract_strided_slice %119 {offsets = [0, 64], sizes = [1, 10], strides = [1, 1]} : vector<1x128xf32> to vector<1x10xf32>
    %124 = vector.extract_strided_slice %120 {offsets = [0, 96], sizes = [1, 10], strides = [1, 1]} : vector<1x128xf32> to vector<1x10xf32>
    %125 = arith.mulf %122, %107 : vector<1x10xf32>
    %126 = arith.mulf %121, %124 : vector<1x10xf32>
    %127 = arith.addf %125, %126 : vector<1x10xf32>
    %128 = math.tanh %127 : vector<1x10xf32>
    %129 = arith.mulf %123, %128 : vector<1x10xf32>
    %c6 = arith.constant 6 : index
    %c0_42 = arith.constant 0 : index
    %130 = vector.load %arg4[%c6, %c0_42] : memref<12x128xf32, #tpu.memory_space<vmem>>, vector<1x128xf32>
    %cst_43 = arith.constant dense<0.000000e+00> : vector<1x128xf32>
    %131 = tpu.matmul %129, %1, %cst_43 {dimension_numbers = #tpu.dot_dimension_numbers<[1], [0], [0], [1], [0, 0, 1, 1], [], []>} : vector<1x10xf32>, vector<10x128xf32>, vector<1x128xf32> -> vector<1x128xf32>
    %132 = arith.addf %130, %131 : vector<1x128xf32>
    %cst_44 = arith.constant 5.000000e-01 : f32
    %133 = vector.broadcast %cst_44 : f32 to vector<1x128xf32>
    %134 = arith.mulf %133, %132 : vector<1x128xf32>
    %135 = math.tanh %134 : vector<1x128xf32>
    %cst_45 = arith.constant 5.000000e-01 : f32
    %136 = vector.broadcast %cst_45 : f32 to vector<1x128xf32>
    %137 = arith.mulf %136, %135 : vector<1x128xf32>
    %cst_46 = arith.constant 5.000000e-01 : f32
    %138 = vector.broadcast %cst_46 : f32 to vector<1x128xf32>
    %139 = arith.addf %137, %138 : vector<1x128xf32>
    %140 = math.tanh %132 : vector<1x128xf32>
    %141 = vector.extract_strided_slice %139 {offsets = [0, 0], sizes = [1, 10], strides = [1, 1]} : vector<1x128xf32> to vector<1x10xf32>
    %142 = vector.extract_strided_slice %139 {offsets = [0, 32], sizes = [1, 10], strides = [1, 1]} : vector<1x128xf32> to vector<1x10xf32>
    %143 = vector.extract_strided_slice %139 {offsets = [0, 64], sizes = [1, 10], strides = [1, 1]} : vector<1x128xf32> to vector<1x10xf32>
    %144 = vector.extract_strided_slice %140 {offsets = [0, 96], sizes = [1, 10], strides = [1, 1]} : vector<1x128xf32> to vector<1x10xf32>
    %145 = arith.mulf %142, %127 : vector<1x10xf32>
    %146 = arith.mulf %141, %144 : vector<1x10xf32>
    %147 = arith.addf %145, %146 : vector<1x10xf32>
    %148 = math.tanh %147 : vector<1x10xf32>
    %149 = arith.mulf %143, %148 : vector<1x10xf32>
    %c7 = arith.constant 7 : index
    %c0_47 = arith.constant 0 : index
    %150 = vector.load %arg4[%c7, %c0_47] : memref<12x128xf32, #tpu.memory_space<vmem>>, vector<1x128xf32>
    %cst_48 = arith.constant dense<0.000000e+00> : vector<1x128xf32>
    %151 = tpu.matmul %149, %1, %cst_48 {dimension_numbers = #tpu.dot_dimension_numbers<[1], [0], [0], [1], [0, 0, 1, 1], [], []>} : vector<1x10xf32>, vector<10x128xf32>, vector<1x128xf32> -> vector<1x128xf32>
    %152 = arith.addf %150, %151 : vector<1x128xf32>
    %cst_49 = arith.constant 5.000000e-01 : f32
    %153 = vector.broadcast %cst_49 : f32 to vector<1x128xf32>
    %154 = arith.mulf %153, %152 : vector<1x128xf32>
    %155 = math.tanh %154 : vector<1x128xf32>
    %cst_50 = arith.constant 5.000000e-01 : f32
    %156 = vector.broadcast %cst_50 : f32 to vector<1x128xf32>
    %157 = arith.mulf %156, %155 : vector<1x128xf32>
    %cst_51 = arith.constant 5.000000e-01 : f32
    %158 = vector.broadcast %cst_51 : f32 to vector<1x128xf32>
    %159 = arith.addf %157, %158 : vector<1x128xf32>
    %160 = math.tanh %152 : vector<1x128xf32>
    %161 = vector.extract_strided_slice %159 {offsets = [0, 0], sizes = [1, 10], strides = [1, 1]} : vector<1x128xf32> to vector<1x10xf32>
    %162 = vector.extract_strided_slice %159 {offsets = [0, 32], sizes = [1, 10], strides = [1, 1]} : vector<1x128xf32> to vector<1x10xf32>
    %163 = vector.extract_strided_slice %159 {offsets = [0, 64], sizes = [1, 10], strides = [1, 1]} : vector<1x128xf32> to vector<1x10xf32>
    %164 = vector.extract_strided_slice %160 {offsets = [0, 96], sizes = [1, 10], strides = [1, 1]} : vector<1x128xf32> to vector<1x10xf32>
    %165 = arith.mulf %162, %147 : vector<1x10xf32>
    %166 = arith.mulf %161, %164 : vector<1x10xf32>
    %167 = arith.addf %165, %166 : vector<1x10xf32>
    %168 = math.tanh %167 : vector<1x10xf32>
    %169 = arith.mulf %163, %168 : vector<1x10xf32>
    %c8 = arith.constant 8 : index
    %c0_52 = arith.constant 0 : index
    %170 = vector.load %arg4[%c8, %c0_52] : memref<12x128xf32, #tpu.memory_space<vmem>>, vector<1x128xf32>
    %cst_53 = arith.constant dense<0.000000e+00> : vector<1x128xf32>
    %171 = tpu.matmul %169, %1, %cst_53 {dimension_numbers = #tpu.dot_dimension_numbers<[1], [0], [0], [1], [0, 0, 1, 1], [], []>} : vector<1x10xf32>, vector<10x128xf32>, vector<1x128xf32> -> vector<1x128xf32>
    %172 = arith.addf %170, %171 : vector<1x128xf32>
    %cst_54 = arith.constant 5.000000e-01 : f32
    %173 = vector.broadcast %cst_54 : f32 to vector<1x128xf32>
    %174 = arith.mulf %173, %172 : vector<1x128xf32>
    %175 = math.tanh %174 : vector<1x128xf32>
    %cst_55 = arith.constant 5.000000e-01 : f32
    %176 = vector.broadcast %cst_55 : f32 to vector<1x128xf32>
    %177 = arith.mulf %176, %175 : vector<1x128xf32>
    %cst_56 = arith.constant 5.000000e-01 : f32
    %178 = vector.broadcast %cst_56 : f32 to vector<1x128xf32>
    %179 = arith.addf %177, %178 : vector<1x128xf32>
    %180 = math.tanh %172 : vector<1x128xf32>
    %181 = vector.extract_strided_slice %179 {offsets = [0, 0], sizes = [1, 10], strides = [1, 1]} : vector<1x128xf32> to vector<1x10xf32>
    %182 = vector.extract_strided_slice %179 {offsets = [0, 32], sizes = [1, 10], strides = [1, 1]} : vector<1x128xf32> to vector<1x10xf32>
    %183 = vector.extract_strided_slice %179 {offsets = [0, 64], sizes = [1, 10], strides = [1, 1]} : vector<1x128xf32> to vector<1x10xf32>
    %184 = vector.extract_strided_slice %180 {offsets = [0, 96], sizes = [1, 10], strides = [1, 1]} : vector<1x128xf32> to vector<1x10xf32>
    %185 = arith.mulf %182, %167 : vector<1x10xf32>
    %186 = arith.mulf %181, %184 : vector<1x10xf32>
    %187 = arith.addf %185, %186 : vector<1x10xf32>
    %188 = math.tanh %187 : vector<1x10xf32>
    %189 = arith.mulf %183, %188 : vector<1x10xf32>
    %c9 = arith.constant 9 : index
    %c0_57 = arith.constant 0 : index
    %190 = vector.load %arg4[%c9, %c0_57] : memref<12x128xf32, #tpu.memory_space<vmem>>, vector<1x128xf32>
    %cst_58 = arith.constant dense<0.000000e+00> : vector<1x128xf32>
    %191 = tpu.matmul %189, %1, %cst_58 {dimension_numbers = #tpu.dot_dimension_numbers<[1], [0], [0], [1], [0, 0, 1, 1], [], []>} : vector<1x10xf32>, vector<10x128xf32>, vector<1x128xf32> -> vector<1x128xf32>
    %192 = arith.addf %190, %191 : vector<1x128xf32>
    %cst_59 = arith.constant 5.000000e-01 : f32
    %193 = vector.broadcast %cst_59 : f32 to vector<1x128xf32>
    %194 = arith.mulf %193, %192 : vector<1x128xf32>
    %195 = math.tanh %194 : vector<1x128xf32>
    %cst_60 = arith.constant 5.000000e-01 : f32
    %196 = vector.broadcast %cst_60 : f32 to vector<1x128xf32>
    %197 = arith.mulf %196, %195 : vector<1x128xf32>
    %cst_61 = arith.constant 5.000000e-01 : f32
    %198 = vector.broadcast %cst_61 : f32 to vector<1x128xf32>
    %199 = arith.addf %197, %198 : vector<1x128xf32>
    %200 = math.tanh %192 : vector<1x128xf32>
    %201 = vector.extract_strided_slice %199 {offsets = [0, 0], sizes = [1, 10], strides = [1, 1]} : vector<1x128xf32> to vector<1x10xf32>
    %202 = vector.extract_strided_slice %199 {offsets = [0, 32], sizes = [1, 10], strides = [1, 1]} : vector<1x128xf32> to vector<1x10xf32>
    %203 = vector.extract_strided_slice %199 {offsets = [0, 64], sizes = [1, 10], strides = [1, 1]} : vector<1x128xf32> to vector<1x10xf32>
    %204 = vector.extract_strided_slice %200 {offsets = [0, 96], sizes = [1, 10], strides = [1, 1]} : vector<1x128xf32> to vector<1x10xf32>
    %205 = arith.mulf %202, %187 : vector<1x10xf32>
    %206 = arith.mulf %201, %204 : vector<1x10xf32>
    %207 = arith.addf %205, %206 : vector<1x10xf32>
    %208 = math.tanh %207 : vector<1x10xf32>
    %209 = arith.mulf %203, %208 : vector<1x10xf32>
    %c10 = arith.constant 10 : index
    %c0_62 = arith.constant 0 : index
    %210 = vector.load %arg4[%c10, %c0_62] : memref<12x128xf32, #tpu.memory_space<vmem>>, vector<1x128xf32>
    %cst_63 = arith.constant dense<0.000000e+00> : vector<1x128xf32>
    %211 = tpu.matmul %209, %1, %cst_63 {dimension_numbers = #tpu.dot_dimension_numbers<[1], [0], [0], [1], [0, 0, 1, 1], [], []>} : vector<1x10xf32>, vector<10x128xf32>, vector<1x128xf32> -> vector<1x128xf32>
    %212 = arith.addf %210, %211 : vector<1x128xf32>
    %cst_64 = arith.constant 5.000000e-01 : f32
    %213 = vector.broadcast %cst_64 : f32 to vector<1x128xf32>
    %214 = arith.mulf %213, %212 : vector<1x128xf32>
    %215 = math.tanh %214 : vector<1x128xf32>
    %cst_65 = arith.constant 5.000000e-01 : f32
    %216 = vector.broadcast %cst_65 : f32 to vector<1x128xf32>
    %217 = arith.mulf %216, %215 : vector<1x128xf32>
    %cst_66 = arith.constant 5.000000e-01 : f32
    %218 = vector.broadcast %cst_66 : f32 to vector<1x128xf32>
    %219 = arith.addf %217, %218 : vector<1x128xf32>
    %220 = math.tanh %212 : vector<1x128xf32>
    %221 = vector.extract_strided_slice %219 {offsets = [0, 0], sizes = [1, 10], strides = [1, 1]} : vector<1x128xf32> to vector<1x10xf32>
    %222 = vector.extract_strided_slice %219 {offsets = [0, 32], sizes = [1, 10], strides = [1, 1]} : vector<1x128xf32> to vector<1x10xf32>
    %223 = vector.extract_strided_slice %219 {offsets = [0, 64], sizes = [1, 10], strides = [1, 1]} : vector<1x128xf32> to vector<1x10xf32>
    %224 = vector.extract_strided_slice %220 {offsets = [0, 96], sizes = [1, 10], strides = [1, 1]} : vector<1x128xf32> to vector<1x10xf32>
    %225 = arith.mulf %222, %207 : vector<1x10xf32>
    %226 = arith.mulf %221, %224 : vector<1x10xf32>
    %227 = arith.addf %225, %226 : vector<1x10xf32>
    %228 = math.tanh %227 : vector<1x10xf32>
    %229 = arith.mulf %223, %228 : vector<1x10xf32>
    %c11 = arith.constant 11 : index
    %c0_67 = arith.constant 0 : index
    %230 = vector.load %arg4[%c11, %c0_67] : memref<12x128xf32, #tpu.memory_space<vmem>>, vector<1x128xf32>
    %cst_68 = arith.constant dense<0.000000e+00> : vector<1x128xf32>
    %231 = tpu.matmul %229, %1, %cst_68 {dimension_numbers = #tpu.dot_dimension_numbers<[1], [0], [0], [1], [0, 0, 1, 1], [], []>} : vector<1x10xf32>, vector<10x128xf32>, vector<1x128xf32> -> vector<1x128xf32>
    %232 = arith.addf %230, %231 : vector<1x128xf32>
    %cst_69 = arith.constant 5.000000e-01 : f32
    %233 = vector.broadcast %cst_69 : f32 to vector<1x128xf32>
    %234 = arith.mulf %233, %232 : vector<1x128xf32>
    %235 = math.tanh %234 : vector<1x128xf32>
    %cst_70 = arith.constant 5.000000e-01 : f32
    %236 = vector.broadcast %cst_70 : f32 to vector<1x128xf32>
    %237 = arith.mulf %236, %235 : vector<1x128xf32>
    %cst_71 = arith.constant 5.000000e-01 : f32
    %238 = vector.broadcast %cst_71 : f32 to vector<1x128xf32>
    %239 = arith.addf %237, %238 : vector<1x128xf32>
    %240 = math.tanh %232 : vector<1x128xf32>
    %241 = vector.extract_strided_slice %239 {offsets = [0, 0], sizes = [1, 10], strides = [1, 1]} : vector<1x128xf32> to vector<1x10xf32>
    %242 = vector.extract_strided_slice %239 {offsets = [0, 32], sizes = [1, 10], strides = [1, 1]} : vector<1x128xf32> to vector<1x10xf32>
    %243 = vector.extract_strided_slice %239 {offsets = [0, 64], sizes = [1, 10], strides = [1, 1]} : vector<1x128xf32> to vector<1x10xf32>
    %244 = vector.extract_strided_slice %240 {offsets = [0, 96], sizes = [1, 10], strides = [1, 1]} : vector<1x128xf32> to vector<1x10xf32>
    %245 = arith.mulf %242, %227 : vector<1x10xf32>
    %246 = arith.mulf %241, %244 : vector<1x10xf32>
    %247 = arith.addf %245, %246 : vector<1x10xf32>
    %248 = math.tanh %247 : vector<1x10xf32>
    %249 = arith.mulf %243, %248 : vector<1x10xf32>
    %250 = tpu.concatenate %189, %209, %229, %249 in 0 : vector<1x10xf32>, vector<1x10xf32>, vector<1x10xf32>, vector<1x10xf32> -> vector<4x10xf32>
    %c0_72 = arith.constant 0 : index
    %c0_73 = arith.constant 0 : index
    %251 = vector.load %arg3[%c0_72, %c0_73] : memref<4x10xf32, #tpu.memory_space<vmem>>, vector<4x10xf32>
    tpu.vector_store %arg3[%c0_72, %c0_73], %250 {strides = array<i32>} : memref<4x10xf32, #tpu.memory_space<vmem>>, vector<4x10xf32>,
    return
  }
}

</mosaic_0001>

<llo_original>
// kernel: tpu_custom_call.1
$region0: #{tpu_custom_call.1}
  #allocation0 [shape = 'u32[]', space=smem, size = 0x4, offset = 0x4, fixed_abs, tag = 'smem constant byte address 0x4 - core index']
  #allocation1 [shape = 'u32[144,128]{1,0:T(1,128)}', space=vmem, size = 0x12000, scoped, tag = 'internal scratch']
  #allocation2 [shape = 'f32[12,128]{1,0:T(8,128)}', space=vmem, size = 0x2000, scoped, tag = 'scratch operand']
  %s0 = inlined_call_operand.hbm [shape: f32[12,10], index: 0, kind: input, shape index: {}]
  %s1 = inlined_call_operand.hbm [shape: f32[40,128], index: 1, kind: input, shape index: {}]
  %s2 = inlined_call_operand.vmem [shape: f32[2,10], index: 2, kind: input, shape index: {}]
  %s3 = inlined_call_operand.hbm [shape: f32[4,10], index: 3, kind: output, shape index: {}]
  %s4 = sld [smem:[#allocation0]]
  $region30: #{tpu_custom_call.1} parent=0
    _
  %s6 = ssub.s32 1, %s4
  %s7 = scalar_select 0, %s6, %s4
  $region1: #{tpu_custom_call.1} parent=0
    #allocation3 [shape = 'u8[8192]{0}', space=vmem, size = 0x2000, scoped, tag = 'input window, operand 0, single buffered']
    #allocation4 [shape = 's32[1]{0}', space=sflag, size = 0x4, scoped, tag = 'scoped memory for tpu_custom_call.1']
    #allocation5 [shape = 's32[1]{0}', space=sflag, size = 0x4, scoped, tag = 'scoped memory for tpu_custom_call.1']
    #allocation6 [shape = 'u8[20480]{0}', space=vmem, size = 0x5000, scoped, tag = 'input window, operand 1, single buffered']
    #allocation7 [shape = 's32[1]{0}', space=sflag, size = 0x4, scoped, tag = 'scoped memory for tpu_custom_call.1']
    #allocation8 [shape = 'u8[2048]{0}', space=vmem, size = 0x800, scoped, tag = 'output window, operand 0, single buffered']
    %8 = vsyncpa [#allocation4], 0
    %9 = vsyncpa [#allocation7], 0
    %10 = vsyncpa [#allocation5], 0
    // Predicated region
    $region2: #{tpu_custom_call.1} parent=1 // pred_check
      _
    $region3: #{tpu_custom_call.1} parent=1 // pred_check_branch
      %12 = sbr.rel (0) target = $region5
    $region4: #{tpu_custom_call.1} parent=1 // pred_region
      %s14 = ssub.s32 256, 256
      %15 = vsyncadd [#allocation4], %s14
      %s16 = sshll.u32 [#allocation3], 4
      %s17 = int_to_ptr.vmem [resolvable:$true] %s16
      %22 = dma.hbm_to_vmem [thread:$0]  %s0, 256, %s17, [#allocation4], 128, 128, 8
    $region5: #{tpu_custom_call.1} parent=1 // pred_fallthru
      _
    // Predicated region
    $region6: #{tpu_custom_call.1} parent=1 // pred_check
      _
    $region7: #{tpu_custom_call.1} parent=1 // pred_check_branch
      %24 = sbr.rel (0) target = $region9
    $region8: #{tpu_custom_call.1} parent=1 // pred_region
      %s26 = ssub.s32 640, 640
      %27 = vsyncadd [#allocation7], %s26
      %s28 = sshll.u32 [#allocation6], 4
      %s29 = int_to_ptr.vmem [resolvable:$true] %s28
      %34 = dma.hbm_to_vmem [thread:$0]  %s1, 640, %s29, [#allocation7], 128, 128, 8
    $region9: #{tpu_custom_call.1} parent=1 // pred_fallthru
      _
    // Predicated region
    $region10: #{tpu_custom_call.1} parent=1 // pred_check
      _
    $region11: #{tpu_custom_call.1} parent=1 // pred_check_branch
      %36 = sbr.rel (0) target = $region13
    $region12: #{tpu_custom_call.1} parent=1 // pred_region
      _
    $region13: #{tpu_custom_call.1} parent=1 // pred_fallthru
      _
    // Predicated region
    $region14: #{tpu_custom_call.1} parent=1 // pred_check
      _
    $region15: #{tpu_custom_call.1} parent=1 // pred_check_branch
      %38 = sbr.rel (0) target = $region17
    $region16: #{tpu_custom_call.1} parent=1 // pred_region
      %39 = dma.done [#allocation4], 256
    $region17: #{tpu_custom_call.1} parent=1 // pred_fallthru
      _
    // Predicated region
    $region18: #{tpu_custom_call.1} parent=1 // pred_check
      _
    $region19: #{tpu_custom_call.1} parent=1 // pred_check_branch
      %41 = sbr.rel (0) target = $region21
    $region20: #{tpu_custom_call.1} parent=1 // pred_region
      %42 = dma.done [#allocation7], 640
    $region21: #{tpu_custom_call.1} parent=1 // pred_fallthru
      _
    %v43 = vld [vmem:[#allocation6] sm:$0xff]
    %v44 = vld [vmem:[#allocation6 + $0x8] sm:$0x3]
    %v45 = vld [vmem:[#allocation6 + $0x10] sm:$0xff]
    %v46 = vld [vmem:[#allocation6 + $0x18] sm:$0x3]
    %v47 = vld [vmem:[#allocation6 + $0x20] sm:$0x1]
    %v48 = vld [vmem:[#allocation3] sm:$0xff]
    %v49 = vld [vmem:[#allocation3 + $0x8] sm:$0xf]
    %v50 = vlaneseq
    %v51 = vshrl.u32 %v50, 7
    %v52 = vsub.s32 0, %v51
    %v53 = vrot.slane %v47, %v52
    %vm54 = vcmask 80896
    %v56 = vsel %vm54, %v48, 0
    %v59 = vsel %vm54, %v49, 0
    %vm61 = vcmask 1041408
    %v63 = vsel %vm61, %v44, 0
    %65 = vmatprep.subr.mxu0 0.0
    %66 = vmatpush1.msra.mxu0 %v43
    %67 = vmatprep.subr.mxu0 0.0
    %68 = vmatpush1.msra.mxu0 %v63
    %69 = vmatprep.subr.mxu0 0.0
    %70 = vmatpush1.msra.mxu0 0.0
    %71 = vmatprep.subr.mxu0 0.0
    %72 = vmatpush1.msra.mxu0 0.0
    %73 = vmatprep.subr.mxu0 0.0
    %74 = vmatpush1.msra.mxu0 0.0
    %75 = vmatprep.subr.mxu0 0.0
    %76 = vmatpush1.msra.mxu0 0.0
    %77 = vmatprep.subr.mxu0 0.0
    %78 = vmatpush1.msra.mxu0 0.0
    %79 = vmatprep.subr.mxu0 0.0
    %80 = vmatpush1.msra.mxu0 0.0
    %81 = vmatprep.subr.mxu0 0.0
    %82 = vmatpush1.msra.mxu0 0.0
    %83 = vmatprep.subr.mxu0 0.0
    %84 = vmatpush1.msra.mxu0 0.0
    %85 = vmatprep.subr.mxu0 0.0
    %86 = vmatpush1.msra.mxu0 0.0
    %87 = vmatprep.subr.mxu0 0.0
    %88 = vmatpush1.msra.mxu0 0.0
    %89 = vmatprep.subr.mxu0 0.0
    %90 = vmatpush1.msra.mxu0 0.0
    %91 = vmatprep.subr.mxu0 0.0
    %92 = vmatpush1.msra.mxu0 0.0
    %93 = vmatprep.subr.mxu0 0.0
    %94 = vmatpush1.msra.mxu0 0.0
    %95 = vmatprep.subr.mxu0 0.0
    %96 = vmatpush1.msra.mxu0 0.0
    %97 = vmatprep.subr.mxu0 0.0
    %98 = vmatpush1.msra.mxu0 0.0
    %99 = vmatprep.subr.mxu0 0.0
    %100 = vmatpush1.msra.mxu0 0.0
    %101 = vmatprep.subr.mxu0 0.0
    %102 = vmatpush1.msra.mxu0 0.0
    %103 = vmatprep.subr.mxu0 0.0
    %104 = vmatpush1.msra.mxu0 0.0
    %105 = vmatprep.subr.mxu0 0.0
    %106 = vmatpush1.msra.mxu0 0.0
    %107 = vmatprep.subr.mxu0 0.0
    %108 = vmatpush1.msra.mxu0 0.0
    %109 = vmatprep.subr.mxu0 0.0
    %110 = vmatpush1.msra.mxu0 0.0
    %111 = vmatprep.subr.mxu0 0.0
    %112 = vmatpush1.msra.mxu0 0.0
    %113 = vmatprep.subr.mxu0 0.0
    %114 = vmatpush1.msra.mxu0 0.0
    %115 = vmatprep.subr.mxu0 0.0
    %116 = vmatpush1.msra.mxu0 0.0
    %117 = vmatprep.subr.mxu0 0.0
    %118 = vmatpush1.msra.mxu0 0.0
    %119 = vmatprep.subr.mxu0 0.0
    %120 = vmatpush1.msra.mxu0 0.0
    %121 = vmatprep.subr.mxu0 0.0
    %122 = vmatpush1.msra.mxu0 0.0
    %123 = vmatprep.subr.mxu0 0.0
    %124 = vmatpush1.msra.mxu0 0.0
    %125 = vmatprep.subr.mxu0 0.0
    %126 = vmatpush1.msra.mxu0 0.0
    %127 = vmatprep.subr.mxu0 0.0
    %128 = vmatpush1.msra.mxu0 0.0
    %129 = vmatprep.mubr.f32.mxu0 0.0
    %130 = vmatmul.mubr.f32.gmra.mrb[0].mxu0 %v56
    %v131 = vpop.f32.mrb[0].mxu0
    %v132 = vadd.f32 %v53, %v131
    %v133 = vpop.f32.mrb[0].mxu0
    %134 = vmatprep.mubr.f32.mxu0 0.0
    %135 = vmatmul.mubr.f32.gmra.mrb[0].mxu0 %v59
    %v136 = vpop.f32.mrb[0].mxu0
    %v137 = vadd.f32 %v53, %v136
    %v138 = vpop.f32.mrb[0].mxu0
    %139 = vdwg.mxu0
    %140 = vst [vmem:[#allocation2] sm:$0xff] %v132
    %141 = vst [vmem:[#allocation2 + $0x8] sm:$0xf] %v137
    %v142 = vld [vmem:[%s2] sm:$0x1]
    %v143 = vld [vmem:[%s2 + $0x1] sm:$0x1]
    %v144 = vld [vmem:[#allocation2] sm:$0x1]
    %v146 = vsel %vm54, %v142, 0
    %v149 = vsel %vm61, %v46, 0
    %151 = vmatprep.subr.mxu0 0.0
    %152 = vmatpush1.msra.mxu0 %v45
    %153 = vmatprep.subr.mxu0 0.0
    %154 = vmatpush1.msra.mxu0 %v149
    %155 = vmatprep.subr.mxu0 0.0
    %156 = vmatpush1.msra.mxu0 0.0
    %157 = vmatprep.subr.mxu0 0.0
    %158 = vmatpush1.msra.mxu0 0.0
    %159 = vmatprep.subr.mxu0 0.0
    %160 = vmatpush1.msra.mxu0 0.0
    %161 = vmatprep.subr.mxu0 0.0
    %162 = vmatpush1.msra.mxu0 0.0
    %163 = vmatprep.subr.mxu0 0.0
    %164 = vmatpush1.msra.mxu0 0.0
    %165 = vmatprep.subr.mxu0 0.0
    %166 = vmatpush1.msra.mxu0 0.0
    %167 = vmatprep.subr.mxu0 0.0
    %168 = vmatpush1.msra.mxu0 0.0
    %169 = vmatprep.subr.mxu0 0.0
    %170 = vmatpush1.msra.mxu0 0.0
    %171 = vmatprep.subr.mxu0 0.0
    %172 = vmatpush1.msra.mxu0 0.0
    %173 = vmatprep.subr.mxu0 0.0
    %174 = vmatpush1.msra.mxu0 0.0
    %175 = vmatprep.subr.mxu0 0.0
    %176 = vmatpush1.msra.mxu0 0.0
    %177 = vmatprep.subr.mxu0 0.0
    %178 = vmatpush1.msra.mxu0 0.0
    %179 = vmatprep.subr.mxu0 0.0
    %180 = vmatpush1.msra.mxu0 0.0
    %181 = vmatprep.subr.mxu0 0.0
    %182 = vmatpush1.msra.mxu0 0.0
    %183 = vmatprep.subr.mxu0 0.0
    %184 = vmatpush1.msra.mxu0 0.0
    %185 = vmatprep.subr.mxu0 0.0
    %186 = vmatpush1.msra.mxu0 0.0
    %187 = vmatprep.subr.mxu0 0.0
    %188 = vmatpush1.msra.mxu0 0.0
    %189 = vmatprep.subr.mxu0 0.0
    %190 = vmatpush1.msra.mxu0 0.0
    %191 = vmatprep.subr.mxu0 0.0
    %192 = vmatpush1.msra.mxu0 0.0
    %193 = vmatprep.subr.mxu0 0.0
    %194 = vmatpush1.msra.mxu0 0.0
    %195 = vmatprep.subr.mxu0 0.0
    %196 = vmatpush1.msra.mxu0 0.0
    %197 = vmatprep.subr.mxu0 0.0
    %198 = vmatpush1.msra.mxu0 0.0
    %199 = vmatprep.subr.mxu0 0.0
    %200 = vmatpush1.msra.mxu0 0.0
    %201 = vmatprep.subr.mxu0 0.0
    %202 = vmatpush1.msra.mxu0 0.0
    %203 = vmatprep.subr.mxu0 0.0
    %204 = vmatpush1.msra.mxu0 0.0
    %205 = vmatprep.subr.mxu0 0.0
    %206 = vmatpush1.msra.mxu0 0.0
    %207 = vmatprep.subr.mxu0 0.0
    %208 = vmatpush1.msra.mxu0 0.0
    %209 = vmatprep.subr.mxu0 0.0
    %210 = vmatpush1.msra.mxu0 0.0
    %211 = vmatprep.subr.mxu0 0.0
    %212 = vmatpush1.msra.mxu0 0.0
    %213 = vmatprep.subr.mxu0 0.0
    %214 = vmatpush1.msra.mxu0 0.0
    %215 = vmatprep.mubr.f32.mxu0 0.0
    %216 = vmatmul.mubr.f32.gmra.mrb[0].mxu0 %v146
    %v217 = vpop.f32.mrb[0].mxu0
    %v218 = vadd.f32 0.0, %v217
    %v219 = vpop.f32.mrb[0].mxu0
    %220 = vdwg.mxu0
    %v221 = vadd.f32 %v144, %v218
    %v222 = vmul.f32 %v221, 0.5
    %v223 = vtanh.pop %v222
    %v224 = vmul.f32 %v223, 0.5
    %v225 = vadd.f32 %v224, 0.5
    %v226 = vtanh.pop %v221
    %228 = vrot.lane.b32.xlu0 %v143, 32
    %v229 = vpop.permute.xlu0 %228
    %v231 = vmul.f32 %v225, %v229
    %233 = vrot.lane.b32.xlu0 %v226, 32
    %v234 = vpop.permute.xlu0 %233
    %v236 = vmul.f32 %v225, %v234
    %238 = vrot.lane.b32.xlu0 %v236, 32
    %v239 = vpop.permute.xlu0 %238
    %v241 = vadd.f32 %v231, %v239
    %v242 = vtanh.pop %v241
    %244 = vrot.lane.b32.xlu0 %v242, 32
    %v245 = vpop.permute.xlu0 %244
    %v247 = vmul.f32 %v225, %v245
    %v248 = vld [vmem:[#allocation2 + $0x1] sm:$0x1]
    %250 = vrot.lane.b32.xlu0 %v247, 64
    %v251 = vpop.permute.xlu0 %250
    %v252 = vsel %vm54, %v251, 0
    %254 = vmatprep.subr.mxu0 0.0
    %255 = vmatpush1.msra.mxu0 %v45
    %256 = vmatprep.subr.mxu0 0.0
    %257 = vmatpush1.msra.mxu0 %v149
    %258 = vmatprep.subr.mxu0 0.0
    %259 = vmatpush1.msra.mxu0 0.0
    %260 = vmatprep.subr.mxu0 0.0
    %261 = vmatpush1.msra.mxu0 0.0
    %262 = vmatprep.subr.mxu0 0.0
    %263 = vmatpush1.msra.mxu0 0.0
    %264 = vmatprep.subr.mxu0 0.0
    %265 = vmatpush1.msra.mxu0 0.0
    %266 = vmatprep.subr.mxu0 0.0
    %267 = vmatpush1.msra.mxu0 0.0
    %268 = vmatprep.subr.mxu0 0.0
    %269 = vmatpush1.msra.mxu0 0.0
    %270 = vmatprep.subr.mxu0 0.0
    %271 = vmatpush1.msra.mxu0 0.0
    %272 = vmatprep.subr.mxu0 0.0
    %273 = vmatpush1.msra.mxu0 0.0
    %274 = vmatprep.subr.mxu0 0.0
    %275 = vmatpush1.msra.mxu0 0.0
    %276 = vmatprep.subr.mxu0 0.0
    %277 = vmatpush1.msra.mxu0 0.0
    %278 = vmatprep.subr.mxu0 0.0
    %279 = vmatpush1.msra.mxu0 0.0
    %280 = vmatprep.subr.mxu0 0.0
    %281 = vmatpush1.msra.mxu0 0.0
    %282 = vmatprep.subr.mxu0 0.0
    %283 = vmatpush1.msra.mxu0 0.0
    %284 = vmatprep.subr.mxu0 0.0
    %285 = vmatpush1.msra.mxu0 0.0
    %286 = vmatprep.subr.mxu0 0.0
    %287 = vmatpush1.msra.mxu0 0.0
    %288 = vmatprep.subr.mxu0 0.0
    %289 = vmatpush1.msra.mxu0 0.0
    %290 = vmatprep.subr.mxu0 0.0
    %291 = vmatpush1.msra.mxu0 0.0
    %292 = vmatprep.subr.mxu0 0.0
    %293 = vmatpush1.msra.mxu0 0.0
    %294 = vmatprep.subr.mxu0 0.0
    %295 = vmatpush1.msra.mxu0 0.0
    %296 = vmatprep.subr.mxu0 0.0
    %297 = vmatpush1.msra.mxu0 0.0
    %298 = vmatprep.subr.mxu0 0.0
    %299 = vmatpush1.msra.mxu0 0.0
    %300 = vmatprep.subr.mxu0 0.0
    %301 = vmatpush1.msra.mxu0 0.0
    %302 = vmatprep.subr.mxu0 0.0
    %303 = vmatpush1.msra.mxu0 0.0
    %304 = vmatprep.subr.mxu0 0.0
    %305 = vmatpush1.msra.mxu0 0.0
    %306 = vmatprep.subr.mxu0 0.0
    %307 = vmatpush1.msra.mxu0 0.0
    %308 = vmatprep.subr.mxu0 0.0
    %309 = vmatpush1.msra.mxu0 0.0
    %310 = vmatprep.subr.mxu0 0.0
    %311 = vmatpush1.msra.mxu0 0.0
    %312 = vmatprep.subr.mxu0 0.0
    %313 = vmatpush1.msra.mxu0 0.0
    %314 = vmatprep.subr.mxu0 0.0
    %315 = vmatpush1.msra.mxu0 0.0
    %316 = vmatprep.subr.mxu0 0.0
    %317 = vmatpush1.msra.mxu0 0.0
    %318 = vmatprep.mubr.f32.mxu0 0.0
    %319 = vmatmul.mubr.f32.gmra.mrb[0].mxu0 %v252
    %v320 = vpop.f32.mrb[0].mxu0
    %v321 = vadd.f32 0.0, %v320
    %v322 = vpop.f32.mrb[0].mxu0
    %323 = vdwg.mxu0
    %v324 = vadd.f32 %v248, %v321
    %v325 = vmul.f32 %v324, 0.5
    %v326 = vtanh.pop %v325
    %v327 = vmul.f32 %v326, 0.5
    %v328 = vadd.f32 %v327, 0.5
    %v329 = vtanh.pop %v324
    %v330 = vmul.f32 %v328, %v241
    %332 = vrot.lane.b32.xlu0 %v329, 32
    %v333 = vpop.permute.xlu0 %332
    %v335 = vmul.f32 %v328, %v333
    %337 = vrot.lane.b32.xlu0 %v335, 32
    %v338 = vpop.permute.xlu0 %337
    %v340 = vadd.f32 %v330, %v338
    %v341 = vtanh.pop %v340
    %343 = vrot.lane.b32.xlu0 %v341, 32
    %v344 = vpop.permute.xlu0 %343
    %v346 = vmul.f32 %v328, %v344
    %v347 = vld [vmem:[#allocation2 + $0x2] sm:$0x1]
    %349 = vrot.lane.b32.xlu0 %v346, 64
    %v350 = vpop.permute.xlu0 %349
    %v351 = vsel %vm54, %v350, 0
    %353 = vmatprep.subr.mxu0 0.0
    %354 = vmatpush1.msra.mxu0 %v45
    %355 = vmatprep.subr.mxu0 0.0
    %356 = vmatpush1.msra.mxu0 %v149
    %357 = vmatprep.subr.mxu0 0.0
    %358 = vmatpush1.msra.mxu0 0.0
    %359 = vmatprep.subr.mxu0 0.0
    %360 = vmatpush1.msra.mxu0 0.0
    %361 = vmatprep.subr.mxu0 0.0
    %362 = vmatpush1.msra.mxu0 0.0
    %363 = vmatprep.subr.mxu0 0.0
    %364 = vmatpush1.msra.mxu0 0.0
    %365 = vmatprep.subr.mxu0 0.0
    %366 = vmatpush1.msra.mxu0 0.0
    %367 = vmatprep.subr.mxu0 0.0
    %368 = vmatpush1.msra.mxu0 0.0
    %369 = vmatprep.subr.mxu0 0.0
    %370 = vmatpush1.msra.mxu0 0.0
    %371 = vmatprep.subr.mxu0 0.0
    %372 = vmatpush1.msra.mxu0 0.0
    %373 = vmatprep.subr.mxu0 0.0
    %374 = vmatpush1.msra.mxu0 0.0
    %375 = vmatprep.subr.mxu0 0.0
    %376 = vmatpush1.msra.mxu0 0.0
    %377 = vmatprep.subr.mxu0 0.0
    %378 = vmatpush1.msra.mxu0 0.0
    %379 = vmatprep.subr.mxu0 0.0
    %380 = vmatpush1.msra.mxu0 0.0
    %381 = vmatprep.subr.mxu0 0.0
    %382 = vmatpush1.msra.mxu0 0.0
    %383 = vmatprep.subr.mxu0 0.0
    %384 = vmatpush1.msra.mxu0 0.0
    %385 = vmatprep.subr.mxu0 0.0
    %386 = vmatpush1.msra.mxu0 0.0
    %387 = vmatprep.subr.mxu0 0.0
    %388 = vmatpush1.msra.mxu0 0.0
    %389 = vmatprep.subr.mxu0 0.0
    %390 = vmatpush1.msra.mxu0 0.0
    %391 = vmatprep.subr.mxu0 0.0
    %392 = vmatpush1.msra.mxu0 0.0
    %393 = vmatprep.subr.mxu0 0.0
    %394 = vmatpush1.msra.mxu0 0.0
    %395 = vmatprep.subr.mxu0 0.0
    %396 = vmatpush1.msra.mxu0 0.0
    %397 = vmatprep.subr.mxu0 0.0
    %398 = vmatpush1.msra.mxu0 0.0
    %399 = vmatprep.subr.mxu0 0.0
    %400 = vmatpush1.msra.mxu0 0.0
    %401 = vmatprep.subr.mxu0 0.0
    %402 = vmatpush1.msra.mxu0 0.0
    %403 = vmatprep.subr.mxu0 0.0
    %404 = vmatpush1.msra.mxu0 0.0
    %405 = vmatprep.subr.mxu0 0.0
    %406 = vmatpush1.msra.mxu0 0.0
    %407 = vmatprep.subr.mxu0 0.0
    %408 = vmatpush1.msra.mxu0 0.0
    %409 = vmatprep.subr.mxu0 0.0
    %410 = vmatpush1.msra.mxu0 0.0
    %411 = vmatprep.subr.mxu0 0.0
    %412 = vmatpush1.msra.mxu0 0.0
    %413 = vmatprep.subr.mxu0 0.0
    %414 = vmatpush1.msra.mxu0 0.0
    %415 = vmatprep.subr.mxu0 0.0
    %416 = vmatpush1.msra.mxu0 0.0
    %417 = vmatprep.mubr.f32.mxu0 0.0
    %418 = vmatmul.mubr.f32.gmra.mrb[0].mxu0 %v351
    %v419 = vpop.f32.mrb[0].mxu0
    %v420 = vadd.f32 0.0, %v419
    %v421 = vpop.f32.mrb[0].mxu0
    %422 = vdwg.mxu0
    %v423 = vadd.f32 %v347, %v420
    %v424 = vmul.f32 %v423, 0.5
    %v425 = vtanh.pop %v424
    %v426 = vmul.f32 %v425, 0.5
    %v427 = vadd.f32 %v426, 0.5
    %v428 = vtanh.pop %v423
    %v429 = vmul.f32 %v427, %v340
    %431 = vrot.lane.b32.xlu0 %v428, 32
    %v432 = vpop.permute.xlu0 %431
    %v434 = vmul.f32 %v427, %v432
    %436 = vrot.lane.b32.xlu0 %v434, 32
    %v437 = vpop.permute.xlu0 %436
    %v439 = vadd.f32 %v429, %v437
    %v440 = vtanh.pop %v439
    %442 = vrot.lane.b32.xlu0 %v440, 32
    %v443 = vpop.permute.xlu0 %442
    %v445 = vmul.f32 %v427, %v443
    %v446 = vld [vmem:[#allocation2 + $0x3] sm:$0x1]
    %448 = vrot.lane.b32.xlu0 %v445, 64
    %v449 = vpop.permute.xlu0 %448
    %v450 = vsel %vm54, %v449, 0
    %452 = vmatprep.subr.mxu0 0.0
    %453 = vmatpush1.msra.mxu0 %v45
    %454 = vmatprep.subr.mxu0 0.0
    %455 = vmatpush1.msra.mxu0 %v149
    %456 = vmatprep.subr.mxu0 0.0
    %457 = vmatpush1.msra.mxu0 0.0
    %458 = vmatprep.subr.mxu0 0.0
    %459 = vmatpush1.msra.mxu0 0.0
    %460 = vmatprep.subr.mxu0 0.0
    %461 = vmatpush1.msra.mxu0 0.0
    %462 = vmatprep.subr.mxu0 0.0
    %463 = vmatpush1.msra.mxu0 0.0
    %464 = vmatprep.subr.mxu0 0.0
    %465 = vmatpush1.msra.mxu0 0.0
    %466 = vmatprep.subr.mxu0 0.0
    %467 = vmatpush1.msra.mxu0 0.0
    %468 = vmatprep.subr.mxu0 0.0
    %469 = vmatpush1.msra.mxu0 0.0
    %470 = vmatprep.subr.mxu0 0.0
    %471 = vmatpush1.msra.mxu0 0.0
    %472 = vmatprep.subr.mxu0 0.0
    %473 = vmatpush1.msra.mxu0 0.0
    %474 = vmatprep.subr.mxu0 0.0
    %475 = vmatpush1.msra.mxu0 0.0
    %476 = vmatprep.subr.mxu0 0.0
    %477 = vmatpush1.msra.mxu0 0.0
    %478 = vmatprep.subr.mxu0 0.0
    %479 = vmatpush1.msra.mxu0 0.0
    %480 = vmatprep.subr.mxu0 0.0
    %481 = vmatpush1.msra.mxu0 0.0
    %482 = vmatprep.subr.mxu0 0.0
    %483 = vmatpush1.msra.mxu0 0.0
    %484 = vmatprep.subr.mxu0 0.0
    %485 = vmatpush1.msra.mxu0 0.0
    %486 = vmatprep.subr.mxu0 0.0
    %487 = vmatpush1.msra.mxu0 0.0
    %488 = vmatprep.subr.mxu0 0.0
    %489 = vmatpush1.msra.mxu0 0.0
    %490 = vmatprep.subr.mxu0 0.0
    %491 = vmatpush1.msra.mxu0 0.0
    %492 = vmatprep.subr.mxu0 0.0
    %493 = vmatpush1.msra.mxu0 0.0
    %494 = vmatprep.subr.mxu0 0.0
    %495 = vmatpush1.msra.mxu0 0.0
    %496 = vmatprep.subr.mxu0 0.0
    %497 = vmatpush1.msra.mxu0 0.0
    %498 = vmatprep.subr.mxu0 0.0
    %499 = vmatpush1.msra.mxu0 0.0
    %500 = vmatprep.subr.mxu0 0.0
    %501 = vmatpush1.msra.mxu0 0.0
    %502 = vmatprep.subr.mxu0 0.0
    %503 = vmatpush1.msra.mxu0 0.0
    %504 = vmatprep.subr.mxu0 0.0
    %505 = vmatpush1.msra.mxu0 0.0
    %506 = vmatprep.subr.mxu0 0.0
    %507 = vmatpush1.msra.mxu0 0.0
    %508 = vmatprep.subr.mxu0 0.0
    %509 = vmatpush1.msra.mxu0 0.0
    %510 = vmatprep.subr.mxu0 0.0
    %511 = vmatpush1.msra.mxu0 0.0
    %512 = vmatprep.subr.mxu0 0.0
    %513 = vmatpush1.msra.mxu0 0.0
    %514 = vmatprep.subr.mxu0 0.0
    %515 = vmatpush1.msra.mxu0 0.0
    %516 = vmatprep.mubr.f32.mxu0 0.0
    %517 = vmatmul.mubr.f32.gmra.mrb[0].mxu0 %v450
    %v518 = vpop.f32.mrb[0].mxu0
    %v519 = vadd.f32 0.0, %v518
    %v520 = vpop.f32.mrb[0].mxu0
    %521 = vdwg.mxu0
    %v522 = vadd.f32 %v446, %v519
    %v523 = vmul.f32 %v522, 0.5
    %v524 = vtanh.pop %v523
    %v525 = vmul.f32 %v524, 0.5
    %v526 = vadd.f32 %v525, 0.5
    %v527 = vtanh.pop %v522
    %v528 = vmul.f32 %v526, %v439
    %530 = vrot.lane.b32.xlu0 %v527, 32
    %v531 = vpop.permute.xlu0 %530
    %v533 = vmul.f32 %v526, %v531
    %535 = vrot.lane.b32.xlu0 %v533, 32
    %v536 = vpop.permute.xlu0 %535
    %v538 = vadd.f32 %v528, %v536
    %v539 = vtanh.pop %v538
    %541 = vrot.lane.b32.xlu0 %v539, 32
    %v542 = vpop.permute.xlu0 %541
    %v544 = vmul.f32 %v526, %v542
    %v545 = vld [vmem:[#allocation2 + $0x4] sm:$0x1]
    %547 = vrot.lane.b32.xlu0 %v544, 64
    %v548 = vpop.permute.xlu0 %547
    %v549 = vsel %vm54, %v548, 0
    %551 = vmatprep.subr.mxu0 0.0
    %552 = vmatpush1.msra.mxu0 %v45
    %553 = vmatprep.subr.mxu0 0.0
    %554 = vmatpush1.msra.mxu0 %v149
    %555 = vmatprep.subr.mxu0 0.0
    %556 = vmatpush1.msra.mxu0 0.0
    %557 = vmatprep.subr.mxu0 0.0
    %558 = vmatpush1.msra.mxu0 0.0
    %559 = vmatprep.subr.mxu0 0.0
    %560 = vmatpush1.msra.mxu0 0.0
    %561 = vmatprep.subr.mxu0 0.0
    %562 = vmatpush1.msra.mxu0 0.0
    %563 = vmatprep.subr.mxu0 0.0
    %564 = vmatpush1.msra.mxu0 0.0
    %565 = vmatprep.subr.mxu0 0.0
    %566 = vmatpush1.msra.mxu0 0.0
    %567 = vmatprep.subr.mxu0 0.0
    %568 = vmatpush1.msra.mxu0 0.0
    %569 = vmatprep.subr.mxu0 0.0
    %570 = vmatpush1.msra.mxu0 0.0
    %571 = vmatprep.subr.mxu0 0.0
    %572 = vmatpush1.msra.mxu0 0.0
    %573 = vmatprep.subr.mxu0 0.0
    %574 = vmatpush1.msra.mxu0 0.0
    %575 = vmatprep.subr.mxu0 0.0
    %576 = vmatpush1.msra.mxu0 0.0
    %577 = vmatprep.subr.mxu0 0.0
    %578 = vmatpush1.msra.mxu0 0.0
    %579 = vmatprep.subr.mxu0 0.0
    %580 = vmatpush1.msra.mxu0 0.0
    %581 = vmatprep.subr.mxu0 0.0
    %582 = vmatpush1.msra.mxu0 0.0
    %583 = vmatprep.subr.mxu0 0.0
    %584 = vmatpush1.msra.mxu0 0.0
    %585 = vmatprep.subr.mxu0 0.0
    %586 = vmatpush1.msra.mxu0 0.0
    %587 = vmatprep.subr.mxu0 0.0
    %588 = vmatpush1.msra.mxu0 0.0
    %589 = vmatprep.subr.mxu0 0.0
    %590 = vmatpush1.msra.mxu0 0.0
    %591 = vmatprep.subr.mxu0 0.0
    %592 = vmatpush1.msra.mxu0 0.0
    %593 = vmatprep.subr.mxu0 0.0
    %594 = vmatpush1.msra.mxu0 0.0
    %595 = vmatprep.subr.mxu0 0.0
    %596 = vmatpush1.msra.mxu0 0.0
    %597 = vmatprep.subr.mxu0 0.0
    %598 = vmatpush1.msra.mxu0 0.0
    %599 = vmatprep.subr.mxu0 0.0
    %600 = vmatpush1.msra.mxu0 0.0
    %601 = vmatprep.subr.mxu0 0.0
    %602 = vmatpush1.msra.mxu0 0.0
    %603 = vmatprep.subr.mxu0 0.0
    %604 = vmatpush1.msra.mxu0 0.0
    %605 = vmatprep.subr.mxu0 0.0
    %606 = vmatpush1.msra.mxu0 0.0
    %607 = vmatprep.subr.mxu0 0.0
    %608 = vmatpush1.msra.mxu0 0.0
    %609 = vmatprep.subr.mxu0 0.0
    %610 = vmatpush1.msra.mxu0 0.0
    %611 = vmatprep.subr.mxu0 0.0
    %612 = vmatpush1.msra.mxu0 0.0
    %613 = vmatprep.subr.mxu0 0.0
    %614 = vmatpush1.msra.mxu0 0.0
    %615 = vmatprep.mubr.f32.mxu0 0.0
    %616 = vmatmul.mubr.f32.gmra.mrb[0].mxu0 %v549
    %v617 = vpop.f32.mrb[0].mxu0
    %v618 = vadd.f32 0.0, %v617
    %v619 = vpop.f32.mrb[0].mxu0
    %620 = vdwg.mxu0
    %v621 = vadd.f32 %v545, %v618
    %v622 = vmul.f32 %v621, 0.5
    %v623 = vtanh.pop %v622
    %v624 = vmul.f32 %v623, 0.5
    %v625 = vadd.f32 %v624, 0.5
    %v626 = vtanh.pop %v621
    %v627 = vmul.f32 %v625, %v538
    %629 = vrot.lane.b32.xlu0 %v626, 32
    %v630 = vpop.permute.xlu0 %629
    %v632 = vmul.f32 %v625, %v630
    %634 = vrot.lane.b32.xlu0 %v632, 32
    %v635 = vpop.permute.xlu0 %634
    %v637 = vadd.f32 %v627, %v635
    %v638 = vtanh.pop %v637
    %640 = vrot.lane.b32.xlu0 %v638, 32
    %v641 = vpop.permute.xlu0 %640
    %v643 = vmul.f32 %v625, %v641
    %v644 = vld [vmem:[#allocation2 + $0x5] sm:$0x1]
    %646 = vrot.lane.b32.xlu0 %v643, 64
    %v647 = vpop.permute.xlu0 %646
    %v648 = vsel %vm54, %v647, 0
    %650 = vmatprep.subr.mxu0 0.0
    %651 = vmatpush1.msra.mxu0 %v45
    %652 = vmatprep.subr.mxu0 0.0
    %653 = vmatpush1.msra.mxu0 %v149
    %654 = vmatprep.subr.mxu0 0.0
    %655 = vmatpush1.msra.mxu0 0.0
    %656 = vmatprep.subr.mxu0 0.0
    %657 = vmatpush1.msra.mxu0 0.0
    %658 = vmatprep.subr.mxu0 0.0
    %659 = vmatpush1.msra.mxu0 0.0
    %660 = vmatprep.subr.mxu0 0.0
    %661 = vmatpush1.msra.mxu0 0.0
    %662 = vmatprep.subr.mxu0 0.0
    %663 = vmatpush1.msra.mxu0 0.0
    %664 = vmatprep.subr.mxu0 0.0
    %665 = vmatpush1.msra.mxu0 0.0
    %666 = vmatprep.subr.mxu0 0.0
    %667 = vmatpush1.msra.mxu0 0.0
    %668 = vmatprep.subr.mxu0 0.0
    %669 = vmatpush1.msra.mxu0 0.0
    %670 = vmatprep.subr.mxu0 0.0
    %671 = vmatpush1.msra.mxu0 0.0
    %672 = vmatprep.subr.mxu0 0.0
    %673 = vmatpush1.msra.mxu0 0.0
    %674 = vmatprep.subr.mxu0 0.0
    %675 = vmatpush1.msra.mxu0 0.0
    %676 = vmatprep.subr.mxu0 0.0
    %677 = vmatpush1.msra.mxu0 0.0
    %678 = vmatprep.subr.mxu0 0.0
    %679 = vmatpush1.msra.mxu0 0.0
    %680 = vmatprep.subr.mxu0 0.0
    %681 = vmatpush1.msra.mxu0 0.0
    %682 = vmatprep.subr.mxu0 0.0
    %683 = vmatpush1.msra.mxu0 0.0
    %684 = vmatprep.subr.mxu0 0.0
    %685 = vmatpush1.msra.mxu0 0.0
    %686 = vmatprep.subr.mxu0 0.0
    %687 = vmatpush1.msra.mxu0 0.0
    %688 = vmatprep.subr.mxu0 0.0
    %689 = vmatpush1.msra.mxu0 0.0
    %690 = vmatprep.subr.mxu0 0.0
    %691 = vmatpush1.msra.mxu0 0.0
    %692 = vmatprep.subr.mxu0 0.0
    %693 = vmatpush1.msra.mxu0 0.0
    %694 = vmatprep.subr.mxu0 0.0
    %695 = vmatpush1.msra.mxu0 0.0
    %696 = vmatprep.subr.mxu0 0.0
    %697 = vmatpush1.msra.mxu0 0.0
    %698 = vmatprep.subr.mxu0 0.0
    %699 = vmatpush1.msra.mxu0 0.0
    %700 = vmatprep.subr.mxu0 0.0
    %701 = vmatpush1.msra.mxu0 0.0
    %702 = vmatprep.subr.mxu0 0.0
    %703 = vmatpush1.msra.mxu0 0.0
    %704 = vmatprep.subr.mxu0 0.0
    %705 = vmatpush1.msra.mxu0 0.0
    %706 = vmatprep.subr.mxu0 0.0
    %707 = vmatpush1.msra.mxu0 0.0
    %708 = vmatprep.subr.mxu0 0.0
    %709 = vmatpush1.msra.mxu0 0.0
    %710 = vmatprep.subr.mxu0 0.0
    %711 = vmatpush1.msra.mxu0 0.0
    %712 = vmatprep.subr.mxu0 0.0
    %713 = vmatpush1.msra.mxu0 0.0
    %714 = vmatprep.mubr.f32.mxu0 0.0
    %715 = vmatmul.mubr.f32.gmra.mrb[0].mxu0 %v648
    %v716 = vpop.f32.mrb[0].mxu0
    %v717 = vadd.f32 0.0, %v716
    %v718 = vpop.f32.mrb[0].mxu0
    %719 = vdwg.mxu0
    %v720 = vadd.f32 %v644, %v717
    %v721 = vmul.f32 %v720, 0.5
    %v722 = vtanh.pop %v721
    %v723 = vmul.f32 %v722, 0.5
    %v724 = vadd.f32 %v723, 0.5
    %v725 = vtanh.pop %v720
    %v726 = vmul.f32 %v724, %v637
    %728 = vrot.lane.b32.xlu0 %v725, 32
    %v729 = vpop.permute.xlu0 %728
    %v731 = vmul.f32 %v724, %v729
    %733 = vrot.lane.b32.xlu0 %v731, 32
    %v734 = vpop.permute.xlu0 %733
    %v736 = vadd.f32 %v726, %v734
    %v737 = vtanh.pop %v736
    %739 = vrot.lane.b32.xlu0 %v737, 32
    %v740 = vpop.permute.xlu0 %739
    %v742 = vmul.f32 %v724, %v740
    %v743 = vld [vmem:[#allocation2 + $0x6] sm:$0x1]
    %745 = vrot.lane.b32.xlu0 %v742, 64
    %v746 = vpop.permute.xlu0 %745
    %v747 = vsel %vm54, %v746, 0
    %749 = vmatprep.subr.mxu0 0.0
    %750 = vmatpush1.msra.mxu0 %v45
    %751 = vmatprep.subr.mxu0 0.0
    %752 = vmatpush1.msra.mxu0 %v149
    %753 = vmatprep.subr.mxu0 0.0
    %754 = vmatpush1.msra.mxu0 0.0
    %755 = vmatprep.subr.mxu0 0.0
    %756 = vmatpush1.msra.mxu0 0.0
    %757 = vmatprep.subr.mxu0 0.0
    %758 = vmatpush1.msra.mxu0 0.0
    %759 = vmatprep.subr.mxu0 0.0
    %760 = vmatpush1.msra.mxu0 0.0
    %761 = vmatprep.subr.mxu0 0.0
    %762 = vmatpush1.msra.mxu0 0.0
    %763 = vmatprep.subr.mxu0 0.0
    %764 = vmatpush1.msra.mxu0 0.0
    %765 = vmatprep.subr.mxu0 0.0
    %766 = vmatpush1.msra.mxu0 0.0
    %767 = vmatprep.subr.mxu0 0.0
    %768 = vmatpush1.msra.mxu0 0.0
    %769 = vmatprep.subr.mxu0 0.0
    %770 = vmatpush1.msra.mxu0 0.0
    %771 = vmatprep.subr.mxu0 0.0
    %772 = vmatpush1.msra.mxu0 0.0
    %773 = vmatprep.subr.mxu0 0.0
    %774 = vmatpush1.msra.mxu0 0.0
    %775 = vmatprep.subr.mxu0 0.0
    %776 = vmatpush1.msra.mxu0 0.0
    %777 = vmatprep.subr.mxu0 0.0
    %778 = vmatpush1.msra.mxu0 0.0
    %779 = vmatprep.subr.mxu0 0.0
    %780 = vmatpush1.msra.mxu0 0.0
    %781 = vmatprep.subr.mxu0 0.0
    %782 = vmatpush1.msra.mxu0 0.0
    %783 = vmatprep.subr.mxu0 0.0
    %784 = vmatpush1.msra.mxu0 0.0
    %785 = vmatprep.subr.mxu0 0.0
    %786 = vmatpush1.msra.mxu0 0.0
    %787 = vmatprep.subr.mxu0 0.0
    %788 = vmatpush1.msra.mxu0 0.0
    %789 = vmatprep.subr.mxu0 0.0
    %790 = vmatpush1.msra.mxu0 0.0
    %791 = vmatprep.subr.mxu0 0.0
    %792 = vmatpush1.msra.mxu0 0.0
    %793 = vmatprep.subr.mxu0 0.0
    %794 = vmatpush1.msra.mxu0 0.0
    %795 = vmatprep.subr.mxu0 0.0
    %796 = vmatpush1.msra.mxu0 0.0
    %797 = vmatprep.subr.mxu0 0.0
    %798 = vmatpush1.msra.mxu0 0.0
    %799 = vmatprep.subr.mxu0 0.0
    %800 = vmatpush1.msra.mxu0 0.0
    %801 = vmatprep.subr.mxu0 0.0
    %802 = vmatpush1.msra.mxu0 0.0
    %803 = vmatprep.subr.mxu0 0.0
    %804 = vmatpush1.msra.mxu0 0.0
    %805 = vmatprep.subr.mxu0 0.0
    %806 = vmatpush1.msra.mxu0 0.0
    %807 = vmatprep.subr.mxu0 0.0
    %808 = vmatpush1.msra.mxu0 0.0
    %809 = vmatprep.subr.mxu0 0.0
    %810 = vmatpush1.msra.mxu0 0.0
    %811 = vmatprep.subr.mxu0 0.0
    %812 = vmatpush1.msra.mxu0 0.0
    %813 = vmatprep.mubr.f32.mxu0 0.0
    %814 = vmatmul.mubr.f32.gmra.mrb[0].mxu0 %v747
    %v815 = vpop.f32.mrb[0].mxu0
    %v816 = vadd.f32 0.0, %v815
    %v817 = vpop.f32.mrb[0].mxu0
    %818 = vdwg.mxu0
    %v819 = vadd.f32 %v743, %v816
    %v820 = vmul.f32 %v819, 0.5
    %v821 = vtanh.pop %v820
    %v822 = vmul.f32 %v821, 0.5
    %v823 = vadd.f32 %v822, 0.5
    %v824 = vtanh.pop %v819
    %v825 = vmul.f32 %v823, %v736
    %827 = vrot.lane.b32.xlu0 %v824, 32
    %v828 = vpop.permute.xlu0 %827
    %v830 = vmul.f32 %v823, %v828
    %832 = vrot.lane.b32.xlu0 %v830, 32
    %v833 = vpop.permute.xlu0 %832
    %v835 = vadd.f32 %v825, %v833
    %v836 = vtanh.pop %v835
    %838 = vrot.lane.b32.xlu0 %v836, 32
    %v839 = vpop.permute.xlu0 %838
    %v841 = vmul.f32 %v823, %v839
    %v842 = vld [vmem:[#allocation2 + $0x7] sm:$0x1]
    %844 = vrot.lane.b32.xlu0 %v841, 64
    %v845 = vpop.permute.xlu0 %844
    %v846 = vsel %vm54, %v845, 0
    %848 = vmatprep.subr.mxu0 0.0
    %849 = vmatpush1.msra.mxu0 %v45
    %850 = vmatprep.subr.mxu0 0.0
    %851 = vmatpush1.msra.mxu0 %v149
    %852 = vmatprep.subr.mxu0 0.0
    %853 = vmatpush1.msra.mxu0 0.0
    %854 = vmatprep.subr.mxu0 0.0
    %855 = vmatpush1.msra.mxu0 0.0
    %856 = vmatprep.subr.mxu0 0.0
    %857 = vmatpush1.msra.mxu0 0.0
    %858 = vmatprep.subr.mxu0 0.0
    %859 = vmatpush1.msra.mxu0 0.0
    %860 = vmatprep.subr.mxu0 0.0
    %861 = vmatpush1.msra.mxu0 0.0
    %862 = vmatprep.subr.mxu0 0.0
    %863 = vmatpush1.msra.mxu0 0.0
    %864 = vmatprep.subr.mxu0 0.0
    %865 = vmatpush1.msra.mxu0 0.0
    %866 = vmatprep.subr.mxu0 0.0
    %867 = vmatpush1.msra.mxu0 0.0
    %868 = vmatprep.subr.mxu0 0.0
    %869 = vmatpush1.msra.mxu0 0.0
    %870 = vmatprep.subr.mxu0 0.0
    %871 = vmatpush1.msra.mxu0 0.0
    %872 = vmatprep.subr.mxu0 0.0
    %873 = vmatpush1.msra.mxu0 0.0
    %874 = vmatprep.subr.mxu0 0.0
    %875 = vmatpush1.msra.mxu0 0.0
    %876 = vmatprep.subr.mxu0 0.0
    %877 = vmatpush1.msra.mxu0 0.0
    %878 = vmatprep.subr.mxu0 0.0
    %879 = vmatpush1.msra.mxu0 0.0
    %880 = vmatprep.subr.mxu0 0.0
    %881 = vmatpush1.msra.mxu0 0.0
    %882 = vmatprep.subr.mxu0 0.0
    %883 = vmatpush1.msra.mxu0 0.0
    %884 = vmatprep.subr.mxu0 0.0
    %885 = vmatpush1.msra.mxu0 0.0
    %886 = vmatprep.subr.mxu0 0.0
    %887 = vmatpush1.msra.mxu0 0.0
    %888 = vmatprep.subr.mxu0 0.0
    %889 = vmatpush1.msra.mxu0 0.0
    %890 = vmatprep.subr.mxu0 0.0
    %891 = vmatpush1.msra.mxu0 0.0
    %892 = vmatprep.subr.mxu0 0.0
    %893 = vmatpush1.msra.mxu0 0.0
    %894 = vmatprep.subr.mxu0 0.0
    %895 = vmatpush1.msra.mxu0 0.0
    %896 = vmatprep.subr.mxu0 0.0
    %897 = vmatpush1.msra.mxu0 0.0
    %898 = vmatprep.subr.mxu0 0.0
    %899 = vmatpush1.msra.mxu0 0.0
    %900 = vmatprep.subr.mxu0 0.0
    %901 = vmatpush1.msra.mxu0 0.0
    %902 = vmatprep.subr.mxu0 0.0
    %903 = vmatpush1.msra.mxu0 0.0
    %904 = vmatprep.subr.mxu0 0.0
    %905 = vmatpush1.msra.mxu0 0.0
    %906 = vmatprep.subr.mxu0 0.0
    %907 = vmatpush1.msra.mxu0 0.0
    %908 = vmatprep.subr.mxu0 0.0
    %909 = vmatpush1.msra.mxu0 0.0
    %910 = vmatprep.subr.mxu0 0.0
    %911 = vmatpush1.msra.mxu0 0.0
    %912 = vmatprep.mubr.f32.mxu0 0.0
    %913 = vmatmul.mubr.f32.gmra.mrb[0].mxu0 %v846
    %v914 = vpop.f32.mrb[0].mxu0
    %v915 = vadd.f32 0.0, %v914
    %v916 = vpop.f32.mrb[0].mxu0
    %917 = vdwg.mxu0
    %v918 = vadd.f32 %v842, %v915
    %v919 = vmul.f32 %v918, 0.5
    %v920 = vtanh.pop %v919
    %v921 = vmul.f32 %v920, 0.5
    %v922 = vadd.f32 %v921, 0.5
    %v923 = vtanh.pop %v918
    %v924 = vmul.f32 %v922, %v835
    %926 = vrot.lane.b32.xlu0 %v923, 32
    %v927 = vpop.permute.xlu0 %926
    %v929 = vmul.f32 %v922, %v927
    %931 = vrot.lane.b32.xlu0 %v929, 32
    %v932 = vpop.permute.xlu0 %931
    %v934 = vadd.f32 %v924, %v932
    %v935 = vtanh.pop %v934
    %937 = vrot.lane.b32.xlu0 %v935, 32
    %v938 = vpop.permute.xlu0 %937
    %v940 = vmul.f32 %v922, %v938
    %v941 = vld [vmem:[#allocation2 + $0x8] sm:$0x1]
    %943 = vrot.lane.b32.xlu0 %v940, 64
    %v944 = vpop.permute.xlu0 %943
    %v945 = vsel %vm54, %v944, 0
    %947 = vmatprep.subr.mxu0 0.0
    %948 = vmatpush1.msra.mxu0 %v45
    %949 = vmatprep.subr.mxu0 0.0
    %950 = vmatpush1.msra.mxu0 %v149
    %951 = vmatprep.subr.mxu0 0.0
    %952 = vmatpush1.msra.mxu0 0.0
    %953 = vmatprep.subr.mxu0 0.0
    %954 = vmatpush1.msra.mxu0 0.0
    %955 = vmatprep.subr.mxu0 0.0
    %956 = vmatpush1.msra.mxu0 0.0
    %957 = vmatprep.subr.mxu0 0.0
    %958 = vmatpush1.msra.mxu0 0.0
    %959 = vmatprep.subr.mxu0 0.0
    %960 = vmatpush1.msra.mxu0 0.0
    %961 = vmatprep.subr.mxu0 0.0
    %962 = vmatpush1.msra.mxu0 0.0
    %963 = vmatprep.subr.mxu0 0.0
    %964 = vmatpush1.msra.mxu0 0.0
    %965 = vmatprep.subr.mxu0 0.0
    %966 = vmatpush1.msra.mxu0 0.0
    %967 = vmatprep.subr.mxu0 0.0
    %968 = vmatpush1.msra.mxu0 0.0
    %969 = vmatprep.subr.mxu0 0.0
    %970 = vmatpush1.msra.mxu0 0.0
    %971 = vmatprep.subr.mxu0 0.0
    %972 = vmatpush1.msra.mxu0 0.0
    %973 = vmatprep.subr.mxu0 0.0
    %974 = vmatpush1.msra.mxu0 0.0
    %975 = vmatprep.subr.mxu0 0.0
    %976 = vmatpush1.msra.mxu0 0.0
    %977 = vmatprep.subr.mxu0 0.0
    %978 = vmatpush1.msra.mxu0 0.0
    %979 = vmatprep.subr.mxu0 0.0
    %980 = vmatpush1.msra.mxu0 0.0
    %981 = vmatprep.subr.mxu0 0.0
    %982 = vmatpush1.msra.mxu0 0.0
    %983 = vmatprep.subr.mxu0 0.0
    %984 = vmatpush1.msra.mxu0 0.0
    %985 = vmatprep.subr.mxu0 0.0
    %986 = vmatpush1.msra.mxu0 0.0
    %987 = vmatprep.subr.mxu0 0.0
    %988 = vmatpush1.msra.mxu0 0.0
    %989 = vmatprep.subr.mxu0 0.0
    %990 = vmatpush1.msra.mxu0 0.0
    %991 = vmatprep.subr.mxu0 0.0
    %992 = vmatpush1.msra.mxu0 0.0
    %993 = vmatprep.subr.mxu0 0.0
    %994 = vmatpush1.msra.mxu0 0.0
    %995 = vmatprep.subr.mxu0 0.0
    %996 = vmatpush1.msra.mxu0 0.0
    %997 = vmatprep.subr.mxu0 0.0
    %998 = vmatpush1.msra.mxu0 0.0
    %999 = vmatprep.subr.mxu0 0.0
    %1000 = vmatpush1.msra.mxu0 0.0
    %1001 = vmatprep.subr.mxu0 0.0
    %1002 = vmatpush1.msra.mxu0 0.0
    %1003 = vmatprep.subr.mxu0 0.0
    %1004 = vmatpush1.msra.mxu0 0.0
    %1005 = vmatprep.subr.mxu0 0.0
    %1006 = vmatpush1.msra.mxu0 0.0
    %1007 = vmatprep.subr.mxu0 0.0
    %1008 = vmatpush1.msra.mxu0 0.0
    %1009 = vmatprep.subr.mxu0 0.0
    %1010 = vmatpush1.msra.mxu0 0.0
    %1011 = vmatprep.mubr.f32.mxu0 0.0
    %1012 = vmatmul.mubr.f32.gmra.mrb[0].mxu0 %v945
    %v1013 = vpop.f32.mrb[0].mxu0
    %v1014 = vadd.f32 0.0, %v1013
    %v1015 = vpop.f32.mrb[0].mxu0
    %1016 = vdwg.mxu0
    %v1017 = vadd.f32 %v941, %v1014
    %v1018 = vmul.f32 %v1017, 0.5
    %v1019 = vtanh.pop %v1018
    %v1020 = vmul.f32 %v1019, 0.5
    %v1021 = vadd.f32 %v1020, 0.5
    %v1022 = vtanh.pop %v1017
    %v1023 = vmul.f32 %v1021, %v934
    %1025 = vrot.lane.b32.xlu0 %v1022, 32
    %v1026 = vpop.permute.xlu0 %1025
    %v1028 = vmul.f32 %v1021, %v1026
    %1030 = vrot.lane.b32.xlu0 %v1028, 32
    %v1031 = vpop.permute.xlu0 %1030
    %v1033 = vadd.f32 %v1023, %v1031
    %v1034 = vtanh.pop %v1033
    %1036 = vrot.lane.b32.xlu0 %v1034, 32
    %v1037 = vpop.permute.xlu0 %1036
    %v1039 = vmul.f32 %v1021, %v1037
    %v1040 = vld [vmem:[#allocation2 + $0x9] sm:$0x1]
    %1042 = vrot.lane.b32.xlu0 %v1039, 64
    %v1043 = vpop.permute.xlu0 %1042
    %v1044 = vsel %vm54, %v1043, 0
    %1046 = vmatprep.subr.mxu0 0.0
    %1047 = vmatpush1.msra.mxu0 %v45
    %1048 = vmatprep.subr.mxu0 0.0
    %1049 = vmatpush1.msra.mxu0 %v149
    %1050 = vmatprep.subr.mxu0 0.0
    %1051 = vmatpush1.msra.mxu0 0.0
    %1052 = vmatprep.subr.mxu0 0.0
    %1053 = vmatpush1.msra.mxu0 0.0
    %1054 = vmatprep.subr.mxu0 0.0
    %1055 = vmatpush1.msra.mxu0 0.0
    %1056 = vmatprep.subr.mxu0 0.0
    %1057 = vmatpush1.msra.mxu0 0.0
    %1058 = vmatprep.subr.mxu0 0.0
    %1059 = vmatpush1.msra.mxu0 0.0
    %1060 = vmatprep.subr.mxu0 0.0
    %1061 = vmatpush1.msra.mxu0 0.0
    %1062 = vmatprep.subr.mxu0 0.0
    %1063 = vmatpush1.msra.mxu0 0.0
    %1064 = vmatprep.subr.mxu0 0.0
    %1065 = vmatpush1.msra.mxu0 0.0
    %1066 = vmatprep.subr.mxu0 0.0
    %1067 = vmatpush1.msra.mxu0 0.0
    %1068 = vmatprep.subr.mxu0 0.0
    %1069 = vmatpush1.msra.mxu0 0.0
    %1070 = vmatprep.subr.mxu0 0.0
    %1071 = vmatpush1.msra.mxu0 0.0
    %1072 = vmatprep.subr.mxu0 0.0
    %1073 = vmatpush1.msra.mxu0 0.0
    %1074 = vmatprep.subr.mxu0 0.0
    %1075 = vmatpush1.msra.mxu0 0.0
    %1076 = vmatprep.subr.mxu0 0.0
    %1077 = vmatpush1.msra.mxu0 0.0
    %1078 = vmatprep.subr.mxu0 0.0
    %1079 = vmatpush1.msra.mxu0 0.0
    %1080 = vmatprep.subr.mxu0 0.0
    %1081 = vmatpush1.msra.mxu0 0.0
    %1082 = vmatprep.subr.mxu0 0.0
    %1083 = vmatpush1.msra.mxu0 0.0
    %1084 = vmatprep.subr.mxu0 0.0
    %1085 = vmatpush1.msra.mxu0 0.0
    %1086 = vmatprep.subr.mxu0 0.0
    %1087 = vmatpush1.msra.mxu0 0.0
    %1088 = vmatprep.subr.mxu0 0.0
    %1089 = vmatpush1.msra.mxu0 0.0
    %1090 = vmatprep.subr.mxu0 0.0
    %1091 = vmatpush1.msra.mxu0 0.0
    %1092 = vmatprep.subr.mxu0 0.0
    %1093 = vmatpush1.msra.mxu0 0.0
    %1094 = vmatprep.subr.mxu0 0.0
    %1095 = vmatpush1.msra.mxu0 0.0
    %1096 = vmatprep.subr.mxu0 0.0
    %1097 = vmatpush1.msra.mxu0 0.0
    %1098 = vmatprep.subr.mxu0 0.0
    %1099 = vmatpush1.msra.mxu0 0.0
    %1100 = vmatprep.subr.mxu0 0.0
    %1101 = vmatpush1.msra.mxu0 0.0
    %1102 = vmatprep.subr.mxu0 0.0
    %1103 = vmatpush1.msra.mxu0 0.0
    %1104 = vmatprep.subr.mxu0 0.0
    %1105 = vmatpush1.msra.mxu0 0.0
    %1106 = vmatprep.subr.mxu0 0.0
    %1107 = vmatpush1.msra.mxu0 0.0
    %1108 = vmatprep.subr.mxu0 0.0
    %1109 = vmatpush1.msra.mxu0 0.0
    %1110 = vmatprep.mubr.f32.mxu0 0.0
    %1111 = vmatmul.mubr.f32.gmra.mrb[0].mxu0 %v1044
    %v1112 = vpop.f32.mrb[0].mxu0
    %v1113 = vadd.f32 0.0, %v1112
    %v1114 = vpop.f32.mrb[0].mxu0
    %1115 = vdwg.mxu0
    %v1116 = vadd.f32 %v1040, %v1113
    %v1117 = vmul.f32 %v1116, 0.5
    %v1118 = vtanh.pop %v1117
    %v1119 = vmul.f32 %v1118, 0.5
    %v1120 = vadd.f32 %v1119, 0.5
    %v1121 = vtanh.pop %v1116
    %v1122 = vmul.f32 %v1120, %v1033
    %1124 = vrot.lane.b32.xlu0 %v1121, 32
    %v1125 = vpop.permute.xlu0 %1124
    %v1127 = vmul.f32 %v1120, %v1125
    %1129 = vrot.lane.b32.xlu0 %v1127, 32
    %v1130 = vpop.permute.xlu0 %1129
    %v1132 = vadd.f32 %v1122, %v1130
    %v1133 = vtanh.pop %v1132
    %1135 = vrot.lane.b32.xlu0 %v1133, 32
    %v1136 = vpop.permute.xlu0 %1135
    %v1138 = vmul.f32 %v1120, %v1136
    %v1139 = vld [vmem:[#allocation2 + $0xa] sm:$0x1]
    %1141 = vrot.lane.b32.xlu0 %v1138, 64
    %v1142 = vpop.permute.xlu0 %1141
    %v1143 = vsel %vm54, %v1142, 0
    %1145 = vmatprep.subr.mxu0 0.0
    %1146 = vmatpush1.msra.mxu0 %v45
    %1147 = vmatprep.subr.mxu0 0.0
    %1148 = vmatpush1.msra.mxu0 %v149
    %1149 = vmatprep.subr.mxu0 0.0
    %1150 = vmatpush1.msra.mxu0 0.0
    %1151 = vmatprep.subr.mxu0 0.0
    %1152 = vmatpush1.msra.mxu0 0.0
    %1153 = vmatprep.subr.mxu0 0.0
    %1154 = vmatpush1.msra.mxu0 0.0
    %1155 = vmatprep.subr.mxu0 0.0
    %1156 = vmatpush1.msra.mxu0 0.0
    %1157 = vmatprep.subr.mxu0 0.0
    %1158 = vmatpush1.msra.mxu0 0.0
    %1159 = vmatprep.subr.mxu0 0.0
    %1160 = vmatpush1.msra.mxu0 0.0
    %1161 = vmatprep.subr.mxu0 0.0
    %1162 = vmatpush1.msra.mxu0 0.0
    %1163 = vmatprep.subr.mxu0 0.0
    %1164 = vmatpush1.msra.mxu0 0.0
    %1165 = vmatprep.subr.mxu0 0.0
    %1166 = vmatpush1.msra.mxu0 0.0
    %1167 = vmatprep.subr.mxu0 0.0
    %1168 = vmatpush1.msra.mxu0 0.0
    %1169 = vmatprep.subr.mxu0 0.0
    %1170 = vmatpush1.msra.mxu0 0.0
    %1171 = vmatprep.subr.mxu0 0.0
    %1172 = vmatpush1.msra.mxu0 0.0
    %1173 = vmatprep.subr.mxu0 0.0
    %1174 = vmatpush1.msra.mxu0 0.0
    %1175 = vmatprep.subr.mxu0 0.0
    %1176 = vmatpush1.msra.mxu0 0.0
    %1177 = vmatprep.subr.mxu0 0.0
    %1178 = vmatpush1.msra.mxu0 0.0
    %1179 = vmatprep.subr.mxu0 0.0
    %1180 = vmatpush1.msra.mxu0 0.0
    %1181 = vmatprep.subr.mxu0 0.0
    %1182 = vmatpush1.msra.mxu0 0.0
    %1183 = vmatprep.subr.mxu0 0.0
    %1184 = vmatpush1.msra.mxu0 0.0
    %1185 = vmatprep.subr.mxu0 0.0
    %1186 = vmatpush1.msra.mxu0 0.0
    %1187 = vmatprep.subr.mxu0 0.0
    %1188 = vmatpush1.msra.mxu0 0.0
    %1189 = vmatprep.subr.mxu0 0.0
    %1190 = vmatpush1.msra.mxu0 0.0
    %1191 = vmatprep.subr.mxu0 0.0
    %1192 = vmatpush1.msra.mxu0 0.0
    %1193 = vmatprep.subr.mxu0 0.0
    %1194 = vmatpush1.msra.mxu0 0.0
    %1195 = vmatprep.subr.mxu0 0.0
    %1196 = vmatpush1.msra.mxu0 0.0
    %1197 = vmatprep.subr.mxu0 0.0
    %1198 = vmatpush1.msra.mxu0 0.0
    %1199 = vmatprep.subr.mxu0 0.0
    %1200 = vmatpush1.msra.mxu0 0.0
    %1201 = vmatprep.subr.mxu0 0.0
    %1202 = vmatpush1.msra.mxu0 0.0
    %1203 = vmatprep.subr.mxu0 0.0
    %1204 = vmatpush1.msra.mxu0 0.0
    %1205 = vmatprep.subr.mxu0 0.0
    %1206 = vmatpush1.msra.mxu0 0.0
    %1207 = vmatprep.subr.mxu0 0.0
    %1208 = vmatpush1.msra.mxu0 0.0
    %1209 = vmatprep.mubr.f32.mxu0 0.0
    %1210 = vmatmul.mubr.f32.gmra.mrb[0].mxu0 %v1143
    %v1211 = vpop.f32.mrb[0].mxu0
    %v1212 = vadd.f32 0.0, %v1211
    %v1213 = vpop.f32.mrb[0].mxu0
    %1214 = vdwg.mxu0
    %v1215 = vadd.f32 %v1139, %v1212
    %v1216 = vmul.f32 %v1215, 0.5
    %v1217 = vtanh.pop %v1216
    %v1218 = vmul.f32 %v1217, 0.5
    %v1219 = vadd.f32 %v1218, 0.5
    %v1220 = vtanh.pop %v1215
    %v1221 = vmul.f32 %v1219, %v1132
    %1223 = vrot.lane.b32.xlu0 %v1220, 32
    %v1224 = vpop.permute.xlu0 %1223
    %v1226 = vmul.f32 %v1219, %v1224
    %1228 = vrot.lane.b32.xlu0 %v1226, 32
    %v1229 = vpop.permute.xlu0 %1228
    %v1231 = vadd.f32 %v1221, %v1229
    %v1232 = vtanh.pop %v1231
    %1234 = vrot.lane.b32.xlu0 %v1232, 32
    %v1235 = vpop.permute.xlu0 %1234
    %v1237 = vmul.f32 %v1219, %v1235
    %v1238 = vld [vmem:[#allocation2 + $0xb] sm:$0x1]
    %1240 = vrot.lane.b32.xlu0 %v1237, 64
    %v1241 = vpop.permute.xlu0 %1240
    %v1242 = vsel %vm54, %v1241, 0
    %1244 = vmatprep.subr.mxu0 0.0
    %1245 = vmatpush1.msra.mxu0 %v45
    %1246 = vmatprep.subr.mxu0 0.0
    %1247 = vmatpush1.msra.mxu0 %v149
    %1248 = vmatprep.subr.mxu0 0.0
    %1249 = vmatpush1.msra.mxu0 0.0
    %1250 = vmatprep.subr.mxu0 0.0
    %1251 = vmatpush1.msra.mxu0 0.0
    %1252 = vmatprep.subr.mxu0 0.0
    %1253 = vmatpush1.msra.mxu0 0.0
    %1254 = vmatprep.subr.mxu0 0.0
    %1255 = vmatpush1.msra.mxu0 0.0
    %1256 = vmatprep.subr.mxu0 0.0
    %1257 = vmatpush1.msra.mxu0 0.0
    %1258 = vmatprep.subr.mxu0 0.0
    %1259 = vmatpush1.msra.mxu0 0.0
    %1260 = vmatprep.subr.mxu0 0.0
    %1261 = vmatpush1.msra.mxu0 0.0
    %1262 = vmatprep.subr.mxu0 0.0
    %1263 = vmatpush1.msra.mxu0 0.0
    %1264 = vmatprep.subr.mxu0 0.0
    %1265 = vmatpush1.msra.mxu0 0.0
    %1266 = vmatprep.subr.mxu0 0.0
    %1267 = vmatpush1.msra.mxu0 0.0
    %1268 = vmatprep.subr.mxu0 0.0
    %1269 = vmatpush1.msra.mxu0 0.0
    %1270 = vmatprep.subr.mxu0 0.0
    %1271 = vmatpush1.msra.mxu0 0.0
    %1272 = vmatprep.subr.mxu0 0.0
    %1273 = vmatpush1.msra.mxu0 0.0
    %1274 = vmatprep.subr.mxu0 0.0
    %1275 = vmatpush1.msra.mxu0 0.0
    %1276 = vmatprep.subr.mxu0 0.0
    %1277 = vmatpush1.msra.mxu0 0.0
    %1278 = vmatprep.subr.mxu0 0.0
    %1279 = vmatpush1.msra.mxu0 0.0
    %1280 = vmatprep.subr.mxu0 0.0
    %1281 = vmatpush1.msra.mxu0 0.0
    %1282 = vmatprep.subr.mxu0 0.0
    %1283 = vmatpush1.msra.mxu0 0.0
    %1284 = vmatprep.subr.mxu0 0.0
    %1285 = vmatpush1.msra.mxu0 0.0
    %1286 = vmatprep.subr.mxu0 0.0
    %1287 = vmatpush1.msra.mxu0 0.0
    %1288 = vmatprep.subr.mxu0 0.0
    %1289 = vmatpush1.msra.mxu0 0.0
    %1290 = vmatprep.subr.mxu0 0.0
    %1291 = vmatpush1.msra.mxu0 0.0
    %1292 = vmatprep.subr.mxu0 0.0
    %1293 = vmatpush1.msra.mxu0 0.0
    %1294 = vmatprep.subr.mxu0 0.0
    %1295 = vmatpush1.msra.mxu0 0.0
    %1296 = vmatprep.subr.mxu0 0.0
    %1297 = vmatpush1.msra.mxu0 0.0
    %1298 = vmatprep.subr.mxu0 0.0
    %1299 = vmatpush1.msra.mxu0 0.0
    %1300 = vmatprep.subr.mxu0 0.0
    %1301 = vmatpush1.msra.mxu0 0.0
    %1302 = vmatprep.subr.mxu0 0.0
    %1303 = vmatpush1.msra.mxu0 0.0
    %1304 = vmatprep.subr.mxu0 0.0
    %1305 = vmatpush1.msra.mxu0 0.0
    %1306 = vmatprep.subr.mxu0 0.0
    %1307 = vmatpush1.msra.mxu0 0.0
    %1308 = vmatprep.mubr.f32.mxu0 0.0
    %1309 = vmatmul.mubr.f32.gmra.mrb[0].mxu0 %v1242
    %v1310 = vpop.f32.mrb[0].mxu0
    %v1311 = vadd.f32 0.0, %v1310
    %v1312 = vpop.f32.mrb[0].mxu0
    %1313 = vdwg.mxu0
    %v1314 = vadd.f32 %v1238, %v1311
    %v1315 = vmul.f32 %v1314, 0.5
    %v1316 = vtanh.pop %v1315
    %v1317 = vmul.f32 %v1316, 0.5
    %v1318 = vadd.f32 %v1317, 0.5
    %v1319 = vtanh.pop %v1314
    %v1320 = vmul.f32 %v1318, %v1231
    %1322 = vrot.lane.b32.xlu0 %v1319, 32
    %v1323 = vpop.permute.xlu0 %1322
    %v1325 = vmul.f32 %v1318, %v1323
    %1327 = vrot.lane.b32.xlu0 %v1325, 32
    %v1328 = vpop.permute.xlu0 %1327
    %v1330 = vadd.f32 %v1320, %v1328
    %v1331 = vtanh.pop %v1330
    %1333 = vrot.lane.b32.xlu0 %v1331, 32
    %v1334 = vpop.permute.xlu0 %1333
    %v1336 = vmul.f32 %v1318, %v1334
    %v1337 = vrot.slane %v1138, 7
    %v1339 = vrot.slane %v1237, 6
    %v1342 = vrot.slane %v1336, 5
    %vm1344 = vcmask 1040384
    %v1345 = vsel %vm1344, %v1039, %v1337
    %v1346 = vsel %vm61, %v1345, %v1339
    %vm1347 = vcmask 1042432
    %v1348 = vsel %vm1347, %v1346, %v1342
    %1350 = vrot.lane.b32.xlu0 %v1348, 64
    %v1351 = vpop.permute.xlu0 %1350
    %vm1353 = vcmask 76800
    %1354 = vst.msk [vmem:[#allocation8] sm:$0xf] %vm1353, %v1351
    // Predicated region
    $region22: #{tpu_custom_call.1} parent=1 // pred_check
      _
    $region23: #{tpu_custom_call.1} parent=1 // pred_check_branch
      %1356 = sbr.rel (0) target = $region25
    $region24: #{tpu_custom_call.1} parent=1 // pred_region
      %s1358 = ssub.s32 64, 64
      %1359 = vsyncadd [#allocation5], %s1358
      %s1361 = sshll.u32 [#allocation8], 4
      %s1362 = int_to_ptr.vmem [resolvable:$true] %s1361
      %1364 = dma.vmem_to_hbm [thread:$0]  %s1362, 64, %s3, [#allocation5]
    $region25: #{tpu_custom_call.1} parent=1 // pred_fallthru
      _
    // Predicated region
    $region26: #{tpu_custom_call.1} parent=1 // pred_check
      _
    $region27: #{tpu_custom_call.1} parent=1 // pred_check_branch
      %1366 = sbr.rel (0) target = $region29
    $region28: #{tpu_custom_call.1} parent=1 // pred_region
      %1367 = dma.done [#allocation5], 64
    $region29: #{tpu_custom_call.1} parent=1 // pred_fallthru
      _
    %1368 = vsyncpa [#allocation4], 1
    %1369 = vsyncpa [#allocation7], 1
    %1370 = vsyncpa [#allocation5], 1

</llo_original>
